<compile_context>
chip_gen: v7x
topology: tpu7x:2x2x1
jax: 0.10.0
libtpu: 0.0.40
codegen_flags: <defaults>
</compile_context>

<pallas_src>
import functools

import numpy as np
import jax
import jax.numpy as jnp
from jax import lax
from jax.experimental import pallas as pl
from jax.experimental.pallas import tpu as pltpu

LN2 = float(np.log(2.0))


# ---------------------------------------------------------------------------
# in-kernel math helpers (pure jnp, traced inside the kernel)
# ---------------------------------------------------------------------------
def _approx_std_normal_cdf(x):
  c = float(np.sqrt(2.0 / np.pi))
  return 0.5 * (1.0 + jnp.tanh(c * (x + 0.044715 * x * x * x)))


def _disc_gauss_ll(x, means, log_scales):
  centered = x - means
  inv_stdv = jnp.exp(-log_scales)
  plus_in = inv_stdv * (centered + 1.0 / 60.0)
  cdf_plus = _approx_std_normal_cdf(plus_in)
  min_in = inv_stdv * (centered - 1.0 / 60.0)
  cdf_min = _approx_std_normal_cdf(min_in)
  log_cdf_plus = jnp.log(jnp.maximum(cdf_plus, 1e-12))
  log_one_minus_cdf_min = jnp.log(jnp.maximum(1.0 - cdf_min, 1e-12))
  cdf_delta = cdf_plus - cdf_min
  return jnp.where(
      x < -0.999, log_cdf_plus,
      jnp.where(x > 0.999, log_one_minus_cdf_min,
                jnp.log(jnp.maximum(cdf_delta, 1e-12))))


def _total11(x):
  """Reduce an array of any rank to a [1, 1] tile via keepdims sums."""
  for ax in range(x.ndim - 1, -1, -1):
    x = jnp.sum(x, axis=ax, keepdims=True)
  return x.reshape(1, 1)


# ---------------------------------------------------------------------------
# fused kernel: one grid step == `bt` batch elements
# ---------------------------------------------------------------------------
def _fused_loss_kernel(t_sref,      # SMEM [B] int32 diffusion timesteps (prefetch)
                       cls_ref,     # [1, C, bt*Q]   lane-dense class logits
                       tgt_ref,     # [1, 1, bt*Q]   int32 target classes
                       w_ref,       # [C, 1]         class weights (empty_weight)
                       lb_ref,      # [bt, Gp, T]    left-boundary prefix rows
                       rb_ref,      # [bt, Gp, T]    right-boundary prefix rows
                       spans_ref,   # [bt, Gp, 2]    int32 gt spans (padded)
                       mask_ref,    # [bt, 1, T]     token mask
                       lv_ref,      # [bt, Q, T]     left log-variance
                       rv_ref,      # [bt, Q, T]     right log-variance
                       mpack_ref,   # [bt, 8, Q]     [tmean(2); pmean(2); x0(2); tvar; t]
                       out_ref,     # [1, 1, 1]      per-block partial loss
                       nll_sc,      # VMEM scratch [bt, 1, 1]
                       *, bt, n_gt, n_q, n_tok, n_rows, num_spans, batch,
                       w_ce, w_bd, w_vm):
  f32 = jnp.float32

  # ---- weighted cross-entropy, lane-dense [C, bt*Q] -----------------------
  x = cls_ref[0].astype(f32)                                  # [C, N]
  c, n = x.shape
  tgt = tgt_ref[0]                                            # [1, N] int32
  m = jnp.max(x, axis=0, keepdims=True)
  lse = jnp.log(jnp.sum(jnp.exp(x - m), axis=0, keepdims=True)) + m
  cls_iota = lax.broadcasted_iota(jnp.int32, (c, n), 0)
  onehot = (cls_iota == tgt).astype(f32)                      # [C, N]
  picked = jnp.sum(x * onehot, axis=0, keepdims=True)         # [1, N]
  wsel = jnp.sum(w_ref[...].astype(f32) * onehot, axis=0, keepdims=True)
  # F.cross_entropy(weight, reduction='none') followed by .mean() -> sum / N
  ce_sum = _total11(-wsel * (picked - lse))                   # [1, 1]

  # ---- shared contraction rows (mask folded into the MXU matmuls) --------
  mask_row = mask_ref[...].astype(f32)                        # [bt, 1, T]
  ones_row = jnp.ones((bt, 1, n_tok), f32)

  # ---- boundary BCE: one log(1-p)/element + one log(p)/matched row -------
  spans = spans_ref[...]                                      # [bt, Gp, 2]
  gp = spans.shape[1]
  tok_iota = lax.broadcasted_iota(jnp.int32, (bt, gp, n_tok), 2)
  row_valid = (lax.broadcasted_iota(jnp.int32, (bt, 1, gp), 2)
               < n_gt).astype(f32)                            # kill padded rows

  def bce_side(p_ref, side):
    p = p_ref[...].astype(f32)                                # [bt, Gp, T]
    oh = (tok_iota == spans[:, :, side:side + 1]).astype(f32)
    log1m = jnp.maximum(jnp.log(1.0 - p), -100.0)
    neg_all = jnp.einsum('bzt,bgt->bzg', mask_row, log1m,
                         preferred_element_type=f32)          # [bt,1,Gp]
    p_t = jnp.einsum('bzt,bgt->bzg', ones_row, p * oh,
                     preferred_element_type=f32)
    log1m_t = jnp.einsum('bzt,bgt->bzg', ones_row, log1m * oh,
                         preferred_element_type=f32)
    mask_t = jnp.einsum('bzt,bgt->bzg', mask_row, oh,
                        preferred_element_type=f32)
    logp_t = jnp.maximum(jnp.log(p_t), -100.0)
    # sum_t bce*mask = -[ sum_t log(1-p)m_t + (log p_tgt - log(1-p_tgt)) m_tgt ]
    contrib = neg_all + (logp_t - log1m_t) * mask_t           # [bt,1,Gp]
    return -_total11(contrib * row_valid)                     # [1, 1]

  bd_sum = bce_side(lb_ref, 0) + bce_side(rb_ref, 1)          # [1, 1]

  # ---- variance & mean: KL(true||pred) vs decoder-NLL, lane-dense [bt,2,Q]
  inv_t = 1.0 / n_tok
  lv = lv_ref[...].astype(f32)
  rv = rv_ref[...].astype(f32)
  plog_l = jnp.einsum('bzt,bqt->bzq', ones_row, lv,
                      preferred_element_type=f32) * inv_t     # [bt,1,Q]
  plog_r = jnp.einsum('bzt,bqt->bzq', ones_row, rv,
                      preferred_element_type=f32) * inv_t
  plog2 = jnp.concatenate([plog_l, plog_r], axis=1)           # [bt,2,Q]

  mpack = mpack_ref[...].astype(f32)                          # [bt, 8, Q]
  tmean = mpack[:, 0:2, :]
  pmean = mpack[:, 2:4, :]
  x0 = mpack[:, 4:6, :]
  tvar = mpack[:, 6:7, :]                                     # [bt,1,Q]
  t_f = mpack[:, 7:8, 0:1]                                    # [bt,1,1]

  def per_batch(x3):                                          # [bt,a,b]->[bt,1,1]
    return jnp.sum(jnp.sum(x3, axis=2, keepdims=True), axis=1, keepdims=True)

  denom = 1.0 / (2.0 * n_q * LN2)                             # mean over (Q,2), /ln2
  kl = 0.5 * (-1.0 + plog2 - tvar + jnp.exp(tvar - plog2)
              + (tmean - pmean) ** 2 * jnp.exp(-plog2))       # [bt,2,Q]
  kl_b = per_batch(kl) * denom                                # [bt,1,1]

  # decoder-NLL (EUP-heavy) only when some t in this tile is 0 (rare case).
  base = pl.program_id(0) * bt
  needs_nll = t_sref[base] == 0
  for k in range(1, bt):
    needs_nll = jnp.logical_or(needs_nll, t_sref[base + k] == 0)

  nll_sc[...] = jnp.zeros(nll_sc.shape, f32)

  @pl.when(needs_nll)
  def _():
    nll = -_disc_gauss_ll(x0, pmean, 0.5 * plog2)             # [bt,2,Q]
    nll_sc[...] = per_batch(nll) * denom

  vm_b = jnp.where(t_f == 0.0, nll_sc[...], kl_b)             # [bt,1,1]
  vm_sum = _total11(vm_b)                                     # [1, 1]

  total = ((w_ce / n_rows) * ce_sum
           + (w_bd / num_spans) * bd_sum
           + (w_vm / batch) * vm_sum)                         # [1, 1]
  out_ref[...] = total.reshape(1, 1, 1)


# ---------------------------------------------------------------------------
# ABSADiffusionLoss (forward only)
# ---------------------------------------------------------------------------
class ABSADiffusionLossPallas:

  def __init__(self, aspect_type_count=4, nil_weight=-1.0,
               loss_class_weight=1.0, loss_boundary_weight=1.0,
               loss_variance_and_mean_weight=1.0):
    self.weight_dict = {
        'loss_ce': float(loss_class_weight),
        'loss_boundary': float(loss_boundary_weight),
        'loss_variance_and_mean': float(loss_variance_and_mean_weight),
    }
    ew = np.ones((aspect_type_count, 1), np.float32)
    ew[0, 0] = nil_weight                     # registered buffer `empty_weight`
    self.empty_weight = jnp.asarray(ew)       # [C, 1] (sublane-major for [C,N] CE)

  def __call__(self, *, cls_logits, left_boundary, right_boundary,
               left_variance, right_variance, logits_variance, token_masks,
               gt_types, gt_spans, true_log_variance_clipped, true_mean,
               pre_mean, pre_x_start, t):
    B, Q, C = cls_logits.shape
    T = left_boundary.shape[2]
    G = gt_types.shape[1]
    if B == 0:                                # reference: len(gt_types) == 0
      return jnp.float32(0.1)
    assert G <= Q, "identity matching requires G <= Q"

    # pred_logits_log_variance is dead code in the reference forward.
    del logits_variance

    # TODO(synk): HungarianMatcher (scipy linear_sum_assignment) has no clean
    # Pallas equivalent; identity matching (src=tgt=arange(G)) is used.
    num_spans = B * G                         # sum(targets['sizes'])
    n_rows = B * Q

    # Boundary rows are read as an 8-aligned prefix straight from the full
    # [B,Q,T] arrays (no host-side slice copies); padded rows masked in-kernel.
    gp = min(Q, ((G + 7) // 8) * 8)

    # ---- batch tile: largest divisor of B under a conservative VMEM budget.
    # ~12 MiB of live blocks -> ~24 MiB double-buffered: fits v7x's 64 MiB
    # physical / 32 MiB scoped default, generous headroom on v5e/v6e.
    per_batch_bytes = 4 * (2 * Q * T + 2 * gp * T + T + 2 * gp + 8 * Q
                           + C * Q + Q)
    cap = max(1, (12 * 1024 * 1024) // max(per_batch_bytes, 1))
    bt = 1
    for d in range(1, B + 1):
      if B % d == 0 and d <= cap:
        bt = d
    nblocks = B // bt

    # ---- host-side layout (small arrays only; big [B,Q,T] slabs untouched) -
    target_classes = jnp.concatenate(
        [gt_types.astype(jnp.int32), jnp.zeros((B, Q - G), jnp.int32)], axis=1)
    cls_blk = (jnp.transpose(cls_logits, (0, 2, 1))          # [B, C, Q]
               .reshape(nblocks, bt, C, Q)
               .transpose(0, 2, 1, 3)
               .reshape(nblocks, C, bt * Q))                 # lane-dense CE slab
    tgt_blk = target_classes.reshape(nblocks, 1, bt * Q)

    spans_i32 = gt_spans.astype(jnp.int32)
    if gp > G:
      spans_pad = jnp.concatenate(
          [spans_i32, jnp.zeros((B, gp - G, 2), jnp.int32)], axis=1)
    else:
      spans_pad = spans_i32

    mask3 = token_masks.reshape(B, 1, T)

    # One packed [B, 8, Q] slab: true_mean(l,r), pre_mean(l,r), x0(l,r),
    # true_log_variance (broadcast over Q), t (as float, for the per-batch select).
    t_i32 = jnp.asarray(t, jnp.int32).reshape(B)
    tvar_row = jnp.broadcast_to(
        jnp.reshape(true_log_variance_clipped, (B, 1, 1)).astype(jnp.float32),
        (B, 1, Q))
    t_row = jnp.broadcast_to(
        t_i32.astype(jnp.float32)[:, None, None], (B, 1, Q))
    mpack = jnp.concatenate(
        [jnp.transpose(true_mean, (0, 2, 1)).astype(jnp.float32),
         jnp.transpose(pre_mean, (0, 2, 1)).astype(jnp.float32),
         jnp.transpose(pre_x_start, (0, 2, 1)).astype(jnp.float32),
         tvar_row, t_row], axis=1)                            # [B, 8, Q]

    kernel = functools.partial(
        _fused_loss_kernel,
        bt=bt, n_gt=G, n_q=Q, n_tok=T,
        n_rows=n_rows, num_spans=num_spans, batch=B,
        w_ce=self.weight_dict['loss_ce'],
        w_bd=self.weight_dict['loss_boundary'],
        w_vm=self.weight_dict['loss_variance_and_mean'])

    in_specs = [
        pl.BlockSpec((1, C, bt * Q), lambda i, *_: (i, 0, 0)),   # cls_blk
        pl.BlockSpec((1, 1, bt * Q), lambda i, *_: (i, 0, 0)),   # tgt_blk
        pl.BlockSpec((C, 1), lambda i, *_: (0, 0)),              # empty_weight
        pl.BlockSpec((bt, gp, T), lambda i, *_: (i, 0, 0)),      # left_boundary prefix
        pl.BlockSpec((bt, gp, T), lambda i, *_: (i, 0, 0)),      # right_boundary prefix
        pl.BlockSpec((bt, gp, 2), lambda i, *_: (i, 0, 0)),      # gt_spans (padded)
        pl.BlockSpec((bt, 1, T), lambda i, *_: (i, 0, 0)),       # token_masks
        pl.BlockSpec((bt, Q, T), lambda i, *_: (i, 0, 0)),       # left_variance
        pl.BlockSpec((bt, Q, T), lambda i, *_: (i, 0, 0)),       # right_variance
        pl.BlockSpec((bt, 8, Q), lambda i, *_: (i, 0, 0)),       # mpack
    ]

    grid_spec = pltpu.PrefetchScalarGridSpec(
        num_scalar_prefetch=1,                # t -> SMEM, gates the NLL branch
        grid=(nblocks,),
        in_specs=in_specs,
        out_specs=pl.BlockSpec((1, 1, 1), lambda i, *_: (i, 0, 0)),
        scratch_shapes=[pltpu.VMEM((bt, 1, 1), jnp.float32)])

    cost = pl.CostEstimate(
        flops=int(2 * B * T * (2 * Q + 8 * gp)
                  + 10 * B * (C * Q + 2 * gp * T + 4 * Q)),
        transcendentals=int(B * (2 * C * Q + 2 * gp * T + 24 * Q)),
        bytes_accessed=int(4 * (B * C * Q + B * Q + C + 2 * B * gp * T
                                + 2 * B * gp + B * T + 2 * B * Q * T
                                + 8 * B * Q + nblocks)))

    partials = pl.pallas_call(
        kernel,
        out_shape=jax.ShapeDtypeStruct((nblocks, 1, 1), jnp.float32),
        grid_spec=grid_spec,
        compiler_params=pltpu.CompilerParams(
            dimension_semantics=("parallel",)),     # batch blocks -> both v7x TCs
        cost_estimate=cost,
    )(t_i32, cls_blk, tgt_blk, self.empty_weight,
      left_boundary, right_boundary, spans_pad, mask3,
      left_variance, right_variance, mpack)

    return jnp.sum(partials)


# ---------------------------------------------------------------------------
# demo
# ---------------------------------------------------------------------------
if __name__ == "__main__":
  B, Q, T, C, G = 2, 8, 16, 4, 3
  key = jax.random.PRNGKey(0)
  ks = jax.random.split(key, 12)

  cls_logits = jax.random.normal(ks[0], (B, Q, C), jnp.float32)
  left_boundary = jax.nn.sigmoid(jax.random.normal(ks[1], (B, Q, T), jnp.float32))
  right_boundary = jax.nn.sigmoid(jax.random.normal(ks[2], (B, Q, T), jnp.float32))
  left_variance = 0.5 * jax.random.normal(ks[3], (B, Q, T), jnp.float32)
  right_variance = 0.5 * jax.random.normal(ks[4], (B, Q, T), jnp.float32)
  logits_variance = 0.5 * jax.random.normal(ks[5], (B, Q), jnp.float32)  # unused
  token_masks = (lax.broadcasted_iota(jnp.int32, (B, T), 1) < (T - 2)).astype(jnp.float32)
  true_log_variance_clipped = 0.3 * jax.random.normal(ks[6], (B, 1, 1), jnp.float32)
  true_mean = jax.random.normal(ks[7], (B, Q, 2), jnp.float32)
  pre_mean = jax.random.normal(ks[8], (B, Q, 2), jnp.float32)
  pre_x_start = jnp.tanh(jax.random.normal(ks[9], (B, Q, 2), jnp.float32))
  t = jnp.array([0, 5], jnp.int32)                 # exercises both where-branches
  gt_types = jax.random.randint(ks[10], (B, G), 1, C).astype(jnp.int32)
  gt_spans = jax.random.randint(ks[11], (B, G, 2), 0, T).astype(jnp.int32)

  loss_mod = ABSADiffusionLossPallas(aspect_type_count=C)
  train_loss = loss_mod(
      cls_logits=cls_logits, left_boundary=left_boundary,
      right_boundary=right_boundary, left_variance=left_variance,
      right_variance=right_variance, logits_variance=logits_variance,
      token_masks=token_masks, gt_types=gt_types, gt_spans=gt_spans,
      true_log_variance_clipped=true_log_variance_clipped, true_mean=true_mean,
      pre_mean=pre_mean, pre_x_start=pre_x_start, t=t)

  train_loss = jax.block_until_ready(train_loss)
  assert np.isfinite(float(train_loss))
  print("KERNEL_OK")
</pallas_src>

<mosaic_0001>
module attributes {stable_mosaic.version = 11 : i64} {
  func.func @_fused_loss_kernel(%arg0: i32, %arg1: memref<2xi32, #tpu.memory_space<smem>>, %arg2: memref<1x4x16xf32, #tpu.memory_space<vmem>>, %arg3: memref<1x1x16xi32, #tpu.memory_space<vmem>>, %arg4: memref<4x1xf32, #tpu.memory_space<vmem>>, %arg5: memref<2x8x16xf32, #tpu.memory_space<vmem>>, %arg6: memref<2x8x16xf32, #tpu.memory_space<vmem>>, %arg7: memref<2x8x2xi32, #tpu.memory_space<vmem>>, %arg8: memref<2x1x16xf32, #tpu.memory_space<vmem>>, %arg9: memref<2x8x16xf32, #tpu.memory_space<vmem>>, %arg10: memref<2x8x16xf32, #tpu.memory_space<vmem>>, %arg11: memref<2x8x8xf32, #tpu.memory_space<vmem>>, %arg12: memref<1x1x1xf32, #tpu.memory_space<vmem>>, %arg13: memref<2x1x1xf32, #tpu.memory_space<vmem>>) attributes {dimension_semantics = [#tpu.dimension_semantics<parallel>], iteration_bounds = array<i64: 1>, scalar_prefetch = 1 : i64, scratch_operands = 1 : i64, tpu.core_type = #tpu.core_type<tc>, window_params = [{transform_indices = @transform_0, window_bounds = array<i64: 1, 4, 16>}, {transform_indices = @transform_1, window_bounds = array<i64: 1, 1, 16>}, {pipeline_mode = #tpu.pipeline_mode<synchronous>, transform_indices = @transform_2, window_bounds = array<i64: 4, 1>}, {transform_indices = @transform_3, window_bounds = array<i64: 2, 8, 16>}, {transform_indices = @transform_4, window_bounds = array<i64: 2, 8, 16>}, {transform_indices = @transform_5, window_bounds = array<i64: 2, 8, 2>}, {transform_indices = @transform_6, window_bounds = array<i64: 2, 1, 16>}, {transform_indices = @transform_7, window_bounds = array<i64: 2, 8, 16>}, {transform_indices = @transform_8, window_bounds = array<i64: 2, 8, 16>}, {transform_indices = @transform_9, window_bounds = array<i64: 2, 8, 8>}, {transform_indices = @transform_10, window_bounds = array<i64: 1, 1, 1>}]} {
    %c0 = arith.constant 0 : index
    %c0_0 = arith.constant 0 : index
    %c0_1 = arith.constant 0 : index
    %0 = vector.load %arg2[%c0, %c0_0, %c0_1] : memref<1x4x16xf32, #tpu.memory_space<vmem>>, vector<1x4x16xf32>
    %1 = vector.shape_cast %0 : vector<1x4x16xf32> to vector<4x16xf32>
    %c0_2 = arith.constant 0 : index
    %c0_3 = arith.constant 0 : index
    %c0_4 = arith.constant 0 : index
    %2 = vector.load %arg3[%c0_2, %c0_3, %c0_4] : memref<1x1x16xi32, #tpu.memory_space<vmem>>, vector<1x1x16xi32>
    %3 = vector.shape_cast %2 : vector<1x1x16xi32> to vector<1x16xi32>
    %cst = arith.constant dense<0xFF800000> : vector<16xf32>
    %4 = vector.multi_reduction <maximumf>, %1, %cst [0] : vector<4x16xf32> to vector<16xf32>
    %5 = vector.shape_cast %4 : vector<16xf32> to vector<1x16xf32>
    %6 = vector.broadcast %5 : vector<1x16xf32> to vector<4x16xf32>
    %7 = arith.subf %1, %6 : vector<4x16xf32>
    %8 = math.exp %7 : vector<4x16xf32>
    %cst_5 = arith.constant dense<0.000000e+00> : vector<16xf32>
    %9 = vector.multi_reduction <add>, %8, %cst_5 [0] : vector<4x16xf32> to vector<16xf32>
    %10 = vector.shape_cast %9 : vector<16xf32> to vector<1x16xf32>
    %11 = math.log %10 : vector<1x16xf32>
    %12 = arith.addf %11, %5 : vector<1x16xf32>
    %13 = tpu.iota {dimensions = array<i32: 0>} : vector<4x16xi32>
    %14 = vector.broadcast %3 : vector<1x16xi32> to vector<4x16xi32>
    %15 = arith.cmpi eq, %13, %14 : vector<4x16xi32>
    %16 = arith.extui %15 : vector<4x16xi1> to vector<4x16xi32>
    %17 = arith.sitofp %16 : vector<4x16xi32> to vector<4x16xf32>
    %18 = arith.mulf %1, %17 : vector<4x16xf32>
    %cst_6 = arith.constant dense<0.000000e+00> : vector<16xf32>
    %19 = vector.multi_reduction <add>, %18, %cst_6 [0] : vector<4x16xf32> to vector<16xf32>
    %20 = vector.shape_cast %19 : vector<16xf32> to vector<1x16xf32>
    %c0_7 = arith.constant 0 : index
    %c0_8 = arith.constant 0 : index
    %21 = vector.load %arg4[%c0_7, %c0_8] : memref<4x1xf32, #tpu.memory_space<vmem>>, vector<4x1xf32>
    %22 = vector.broadcast %21 : vector<4x1xf32> to vector<4x16xf32>
    %23 = arith.mulf %22, %17 : vector<4x16xf32>
    %cst_9 = arith.constant dense<0.000000e+00> : vector<16xf32>
    %24 = vector.multi_reduction <add>, %23, %cst_9 [0] : vector<4x16xf32> to vector<16xf32>
    %25 = vector.shape_cast %24 : vector<16xf32> to vector<1x16xf32>
    %cst_10 = arith.constant 0.000000e+00 : f32
    %26 = vector.broadcast %cst_10 : f32 to vector<1x16xf32>
    %27 = arith.subf %26, %25 : vector<1x16xf32>
    %28 = arith.subf %20, %12 : vector<1x16xf32>
    %29 = arith.mulf %27, %28 : vector<1x16xf32>
    %cst_11 = arith.constant dense<0.000000e+00> : vector<1xf32>
    %30 = vector.multi_reduction <add>, %29, %cst_11 [1] : vector<1x16xf32> to vector<1xf32>
    %31 = vector.shape_cast %30 : vector<1xf32> to vector<1x1xf32>
    %cst_12 = arith.constant dense<0.000000e+00> : vector<1xf32>
    %32 = vector.multi_reduction <add>, %31, %cst_12 [0] : vector<1x1xf32> to vector<1xf32>
    %33 = vector.shape_cast %32 : vector<1xf32> to vector<1x1xf32>
    %c0_13 = arith.constant 0 : index
    %c0_14 = arith.constant 0 : index
    %c0_15 = arith.constant 0 : index
    %34 = vector.load %arg8[%c0_13, %c0_14, %c0_15] : memref<2x1x16xf32, #tpu.memory_space<vmem>>, vector<2x1x16xf32>
    %cst_16 = arith.constant 1.000000e+00 : f32
    %35 = vector.broadcast %cst_16 : f32 to vector<2x1x16xf32>
    %c0_17 = arith.constant 0 : index
    %c0_18 = arith.constant 0 : index
    %c0_19 = arith.constant 0 : index
    %36 = vector.load %arg7[%c0_17, %c0_18, %c0_19] : memref<2x8x2xi32, #tpu.memory_space<vmem>>, vector<2x8x2xi32>
    %37 = tpu.iota {dimensions = array<i32: 2>} : vector<2x8x16xi32>
    %38 = tpu.iota {dimensions = array<i32: 2>} : vector<2x1x8xi32>
    %c3_i32 = arith.constant 3 : i32
    %39 = vector.broadcast %c3_i32 : i32 to vector<2x1x8xi32>
    %40 = arith.cmpi slt, %38, %39 : vector<2x1x8xi32>
    %41 = arith.extui %40 : vector<2x1x8xi1> to vector<2x1x8xi32>
    %42 = arith.sitofp %41 : vector<2x1x8xi32> to vector<2x1x8xf32>
    %c0_20 = arith.constant 0 : index
    %c0_21 = arith.constant 0 : index
    %c0_22 = arith.constant 0 : index
    %43 = vector.load %arg5[%c0_20, %c0_21, %c0_22] : memref<2x8x16xf32, #tpu.memory_space<vmem>>, vector<2x8x16xf32>
    %44 = vector.extract_strided_slice %36 {offsets = [0, 0, 0], sizes = [2, 8, 1], strides = [1, 1, 1]} : vector<2x8x2xi32> to vector<2x8x1xi32>
    %45 = vector.broadcast %44 : vector<2x8x1xi32> to vector<2x8x16xi32>
    %46 = arith.cmpi eq, %37, %45 : vector<2x8x16xi32>
    %47 = arith.extui %46 : vector<2x8x16xi1> to vector<2x8x16xi32>
    %48 = arith.sitofp %47 : vector<2x8x16xi32> to vector<2x8x16xf32>
    %cst_23 = arith.constant 1.000000e+00 : f32
    %49 = vector.broadcast %cst_23 : f32 to vector<2x8x16xf32>
    %50 = arith.subf %49, %43 : vector<2x8x16xf32>
    %51 = math.log %50 : vector<2x8x16xf32>
    %cst_24 = arith.constant -1.000000e+02 : f32
    %52 = vector.broadcast %cst_24 : f32 to vector<2x8x16xf32>
    %53 = arith.maximumf %51, %52 : vector<2x8x16xf32>
    "tpu.trace_start"() <{level = 10 : i32, message = "bzt,bgt->bzg"}> : () -> ()
    %cst_25 = arith.constant dense<0.000000e+00> : vector<2x1x8xf32>
    %54 = tpu.matmul %34, %53, %cst_25 {dimension_numbers = #tpu.dot_dimension_numbers<[2], [2], [1], [1], [0, 0, 0, 1, 1, 1], [0], [0]>} : vector<2x1x16xf32>, vector<2x8x16xf32>, vector<2x1x8xf32> -> vector<2x1x8xf32>
    "tpu.trace_stop"() : () -> ()
    %55 = arith.mulf %43, %48 : vector<2x8x16xf32>
    "tpu.trace_start"() <{level = 10 : i32, message = "bzt,bgt->bzg"}> : () -> ()
    %cst_26 = arith.constant dense<0.000000e+00> : vector<2x1x8xf32>
    %56 = tpu.matmul %35, %55, %cst_26 {dimension_numbers = #tpu.dot_dimension_numbers<[2], [2], [1], [1], [0, 0, 0, 1, 1, 1], [0], [0]>} : vector<2x1x16xf32>, vector<2x8x16xf32>, vector<2x1x8xf32> -> vector<2x1x8xf32>
    "tpu.trace_stop"() : () -> ()
    %57 = arith.mulf %53, %48 : vector<2x8x16xf32>
    "tpu.trace_start"() <{level = 10 : i32, message = "bzt,bgt->bzg"}> : () -> ()
    %cst_27 = arith.constant dense<0.000000e+00> : vector<2x1x8xf32>
    %58 = tpu.matmul %35, %57, %cst_27 {dimension_numbers = #tpu.dot_dimension_numbers<[2], [2], [1], [1], [0, 0, 0, 1, 1, 1], [0], [0]>} : vector<2x1x16xf32>, vector<2x8x16xf32>, vector<2x1x8xf32> -> vector<2x1x8xf32>
    %cst_28 = arith.constant dense<0.000000e+00> : vector<2x1x8xf32>
    %59 = tpu.matmul %34, %48, %cst_28 {dimension_numbers = #tpu.dot_dimension_numbers<[2], [2], [1], [1], [0, 0, 0, 1, 1, 1], [0], [0]>} : vector<2x1x16xf32>, vector<2x8x16xf32>, vector<2x1x8xf32> -> vector<2x1x8xf32>
    "tpu.trace_stop"() : () -> ()
    %60 = math.log %56 : vector<2x1x8xf32>
    %cst_29 = arith.constant -1.000000e+02 : f32
    %61 = vector.broadcast %cst_29 : f32 to vector<2x1x8xf32>
    %62 = arith.maximumf %60, %61 : vector<2x1x8xf32>
    %63 = arith.subf %62, %58 : vector<2x1x8xf32>
    %64 = arith.mulf %63, %59 : vector<2x1x8xf32>
    %65 = arith.addf %54, %64 : vector<2x1x8xf32>
    %66 = arith.mulf %65, %42 : vector<2x1x8xf32>
    %cst_30 = arith.constant dense<0.000000e+00> : vector<2x1xf32>
    %67 = vector.multi_reduction <add>, %66, %cst_30 [2] : vector<2x1x8xf32> to vector<2x1xf32>
    %68 = vector.shape_cast %67 : vector<2x1xf32> to vector<2x1x1xf32>
    %cst_31 = arith.constant dense<0.000000e+00> : vector<2x1xf32>
    %69 = vector.multi_reduction <add>, %68, %cst_31 [1] : vector<2x1x1xf32> to vector<2x1xf32>
    %70 = vector.shape_cast %69 : vector<2x1xf32> to vector<2x1x1xf32>
    %cst_32 = arith.constant dense<0.000000e+00> : vector<1x1xf32>
    %71 = vector.multi_reduction <add>, %70, %cst_32 [0] : vector<2x1x1xf32> to vector<1x1xf32>
    %72 = vector.shape_cast %71 : vector<1x1xf32> to vector<1x1x1xf32>
    %73 = vector.shape_cast %72 : vector<1x1x1xf32> to vector<1x1xf32>
    %cst_33 = arith.constant 0.000000e+00 : f32
    %74 = vector.broadcast %cst_33 : f32 to vector<1x1xf32>
    %75 = arith.subf %74, %73 : vector<1x1xf32>
    %c0_34 = arith.constant 0 : index
    %c0_35 = arith.constant 0 : index
    %c0_36 = arith.constant 0 : index
    %76 = vector.load %arg6[%c0_34, %c0_35, %c0_36] : memref<2x8x16xf32, #tpu.memory_space<vmem>>, vector<2x8x16xf32>
    %77 = vector.extract_strided_slice %36 {offsets = [0, 0, 1], sizes = [2, 8, 1], strides = [1, 1, 1]} : vector<2x8x2xi32> to vector<2x8x1xi32>
    %78 = vector.broadcast %77 : vector<2x8x1xi32> to vector<2x8x16xi32>
    %79 = arith.cmpi eq, %37, %78 : vector<2x8x16xi32>
    %80 = arith.extui %79 : vector<2x8x16xi1> to vector<2x8x16xi32>
    %81 = arith.sitofp %80 : vector<2x8x16xi32> to vector<2x8x16xf32>
    %cst_37 = arith.constant 1.000000e+00 : f32
    %82 = vector.broadcast %cst_37 : f32 to vector<2x8x16xf32>
    %83 = arith.subf %82, %76 : vector<2x8x16xf32>
    %84 = math.log %83 : vector<2x8x16xf32>
    %cst_38 = arith.constant -1.000000e+02 : f32
    %85 = vector.broadcast %cst_38 : f32 to vector<2x8x16xf32>
    %86 = arith.maximumf %84, %85 : vector<2x8x16xf32>
    "tpu.trace_start"() <{level = 10 : i32, message = "bzt,bgt->bzg"}> : () -> ()
    %cst_39 = arith.constant dense<0.000000e+00> : vector<2x1x8xf32>
    %87 = tpu.matmul %34, %86, %cst_39 {dimension_numbers = #tpu.dot_dimension_numbers<[2], [2], [1], [1], [0, 0, 0, 1, 1, 1], [0], [0]>} : vector<2x1x16xf32>, vector<2x8x16xf32>, vector<2x1x8xf32> -> vector<2x1x8xf32>
    "tpu.trace_stop"() : () -> ()
    %88 = arith.mulf %76, %81 : vector<2x8x16xf32>
    "tpu.trace_start"() <{level = 10 : i32, message = "bzt,bgt->bzg"}> : () -> ()
    %cst_40 = arith.constant dense<0.000000e+00> : vector<2x1x8xf32>
    %89 = tpu.matmul %35, %88, %cst_40 {dimension_numbers = #tpu.dot_dimension_numbers<[2], [2], [1], [1], [0, 0, 0, 1, 1, 1], [0], [0]>} : vector<2x1x16xf32>, vector<2x8x16xf32>, vector<2x1x8xf32> -> vector<2x1x8xf32>
    "tpu.trace_stop"() : () -> ()
    %90 = arith.mulf %86, %81 : vector<2x8x16xf32>
    "tpu.trace_start"() <{level = 10 : i32, message = "bzt,bgt->bzg"}> : () -> ()
    %cst_41 = arith.constant dense<0.000000e+00> : vector<2x1x8xf32>
    %91 = tpu.matmul %35, %90, %cst_41 {dimension_numbers = #tpu.dot_dimension_numbers<[2], [2], [1], [1], [0, 0, 0, 1, 1, 1], [0], [0]>} : vector<2x1x16xf32>, vector<2x8x16xf32>, vector<2x1x8xf32> -> vector<2x1x8xf32>
    %cst_42 = arith.constant dense<0.000000e+00> : vector<2x1x8xf32>
    %92 = tpu.matmul %34, %81, %cst_42 {dimension_numbers = #tpu.dot_dimension_numbers<[2], [2], [1], [1], [0, 0, 0, 1, 1, 1], [0], [0]>} : vector<2x1x16xf32>, vector<2x8x16xf32>, vector<2x1x8xf32> -> vector<2x1x8xf32>
    "tpu.trace_stop"() : () -> ()
    %93 = math.log %89 : vector<2x1x8xf32>
    %cst_43 = arith.constant -1.000000e+02 : f32
    %94 = vector.broadcast %cst_43 : f32 to vector<2x1x8xf32>
    %95 = arith.maximumf %93, %94 : vector<2x1x8xf32>
    %96 = arith.subf %95, %91 : vector<2x1x8xf32>
    %97 = arith.mulf %96, %92 : vector<2x1x8xf32>
    %98 = arith.addf %87, %97 : vector<2x1x8xf32>
    %99 = arith.mulf %98, %42 : vector<2x1x8xf32>
    %cst_44 = arith.constant dense<0.000000e+00> : vector<2x1xf32>
    %100 = vector.multi_reduction <add>, %99, %cst_44 [2] : vector<2x1x8xf32> to vector<2x1xf32>
    %101 = vector.shape_cast %100 : vector<2x1xf32> to vector<2x1x1xf32>
    %cst_45 = arith.constant dense<0.000000e+00> : vector<2x1xf32>
    %102 = vector.multi_reduction <add>, %101, %cst_45 [1] : vector<2x1x1xf32> to vector<2x1xf32>
    %103 = vector.shape_cast %102 : vector<2x1xf32> to vector<2x1x1xf32>
    %cst_46 = arith.constant dense<0.000000e+00> : vector<1x1xf32>
    %104 = vector.multi_reduction <add>, %103, %cst_46 [0] : vector<2x1x1xf32> to vector<1x1xf32>
    %105 = vector.shape_cast %104 : vector<1x1xf32> to vector<1x1x1xf32>
    %106 = vector.shape_cast %105 : vector<1x1x1xf32> to vector<1x1xf32>
    %cst_47 = arith.constant 0.000000e+00 : f32
    %107 = vector.broadcast %cst_47 : f32 to vector<1x1xf32>
    %108 = arith.subf %107, %106 : vector<1x1xf32>
    %109 = arith.addf %75, %108 : vector<1x1xf32>
    %c0_48 = arith.constant 0 : index
    %c0_49 = arith.constant 0 : index
    %c0_50 = arith.constant 0 : index
    %110 = vector.load %arg9[%c0_48, %c0_49, %c0_50] : memref<2x8x16xf32, #tpu.memory_space<vmem>>, vector<2x8x16xf32>
    %c0_51 = arith.constant 0 : index
    %c0_52 = arith.constant 0 : index
    %c0_53 = arith.constant 0 : index
    %111 = vector.load %arg10[%c0_51, %c0_52, %c0_53] : memref<2x8x16xf32, #tpu.memory_space<vmem>>, vector<2x8x16xf32>
    "tpu.trace_start"() <{level = 10 : i32, message = "bzt,bqt->bzq"}> : () -> ()
    %cst_54 = arith.constant dense<0.000000e+00> : vector<2x1x8xf32>
    %112 = tpu.matmul %35, %110, %cst_54 {dimension_numbers = #tpu.dot_dimension_numbers<[2], [2], [1], [1], [0, 0, 0, 1, 1, 1], [0], [0]>} : vector<2x1x16xf32>, vector<2x8x16xf32>, vector<2x1x8xf32> -> vector<2x1x8xf32>
    "tpu.trace_stop"() : () -> ()
    %cst_55 = arith.constant 6.250000e-02 : f32
    %113 = vector.broadcast %cst_55 : f32 to vector<2x1x8xf32>
    %114 = arith.mulf %112, %113 : vector<2x1x8xf32>
    "tpu.trace_start"() <{level = 10 : i32, message = "bzt,bqt->bzq"}> : () -> ()
    %cst_56 = arith.constant dense<0.000000e+00> : vector<2x1x8xf32>
    %115 = tpu.matmul %35, %111, %cst_56 {dimension_numbers = #tpu.dot_dimension_numbers<[2], [2], [1], [1], [0, 0, 0, 1, 1, 1], [0], [0]>} : vector<2x1x16xf32>, vector<2x8x16xf32>, vector<2x1x8xf32> -> vector<2x1x8xf32>
    "tpu.trace_stop"() : () -> ()
    %cst_57 = arith.constant 6.250000e-02 : f32
    %116 = vector.broadcast %cst_57 : f32 to vector<2x1x8xf32>
    %117 = arith.mulf %115, %116 : vector<2x1x8xf32>
    %118 = tpu.concatenate %114, %117 in 1 : vector<2x1x8xf32>, vector<2x1x8xf32> -> vector<2x2x8xf32>
    %c0_58 = arith.constant 0 : index
    %c0_59 = arith.constant 0 : index
    %c0_60 = arith.constant 0 : index
    %119 = vector.load %arg11[%c0_58, %c0_59, %c0_60] : memref<2x8x8xf32, #tpu.memory_space<vmem>>, vector<2x8x8xf32>
    %120 = vector.extract_strided_slice %119 {offsets = [0, 0, 0], sizes = [2, 2, 8], strides = [1, 1, 1]} : vector<2x8x8xf32> to vector<2x2x8xf32>
    %121 = vector.extract_strided_slice %119 {offsets = [0, 2, 0], sizes = [2, 2, 8], strides = [1, 1, 1]} : vector<2x8x8xf32> to vector<2x2x8xf32>
    %122 = vector.extract_strided_slice %119 {offsets = [0, 4, 0], sizes = [2, 2, 8], strides = [1, 1, 1]} : vector<2x8x8xf32> to vector<2x2x8xf32>
    %123 = vector.extract_strided_slice %119 {offsets = [0, 6, 0], sizes = [2, 1, 8], strides = [1, 1, 1]} : vector<2x8x8xf32> to vector<2x1x8xf32>
    %124 = vector.extract_strided_slice %119 {offsets = [0, 7, 0], sizes = [2, 1, 1], strides = [1, 1, 1]} : vector<2x8x8xf32> to vector<2x1x1xf32>
    %cst_61 = arith.constant -1.000000e+00 : f32
    %125 = vector.broadcast %cst_61 : f32 to vector<2x2x8xf32>
    %126 = arith.addf %125, %118 : vector<2x2x8xf32>
    %127 = vector.broadcast %123 : vector<2x1x8xf32> to vector<2x2x8xf32>
    %128 = arith.subf %126, %127 : vector<2x2x8xf32>
    %129 = vector.broadcast %123 : vector<2x1x8xf32> to vector<2x2x8xf32>
    %130 = arith.subf %129, %118 : vector<2x2x8xf32>
    %131 = math.exp %130 : vector<2x2x8xf32>
    %132 = arith.addf %128, %131 : vector<2x2x8xf32>
    %133 = arith.subf %120, %121 : vector<2x2x8xf32>
    %134 = arith.mulf %133, %133 : vector<2x2x8xf32>
    %cst_62 = arith.constant 0.000000e+00 : f32
    %135 = vector.broadcast %cst_62 : f32 to vector<2x2x8xf32>
    %136 = arith.subf %135, %118 : vector<2x2x8xf32>
    %137 = math.exp %136 : vector<2x2x8xf32>
    %138 = arith.mulf %134, %137 : vector<2x2x8xf32>
    %139 = arith.addf %132, %138 : vector<2x2x8xf32>
    %cst_63 = arith.constant 5.000000e-01 : f32
    %140 = vector.broadcast %cst_63 : f32 to vector<2x2x8xf32>
    %141 = arith.mulf %140, %139 : vector<2x2x8xf32>
    %cst_64 = arith.constant dense<0.000000e+00> : vector<2x2xf32>
    %142 = vector.multi_reduction <add>, %141, %cst_64 [2] : vector<2x2x8xf32> to vector<2x2xf32>
    %143 = vector.shape_cast %142 : vector<2x2xf32> to vector<2x2x1xf32>
    %cst_65 = arith.constant dense<0.000000e+00> : vector<2x1xf32>
    %144 = vector.multi_reduction <add>, %143, %cst_65 [1] : vector<2x2x1xf32> to vector<2x1xf32>
    %145 = vector.shape_cast %144 : vector<2x1xf32> to vector<2x1x1xf32>
    %cst_66 = arith.constant 0.0901684388 : f32
    %146 = vector.broadcast %cst_66 : f32 to vector<2x1x1xf32>
    %147 = arith.mulf %145, %146 : vector<2x1x1xf32>
    %c2_i32 = arith.constant 2 : i32
    %148 = arith.muli %arg0, %c2_i32 : i32
    %149 = arith.index_cast %148 : i32 to index
    %150 = memref.load %arg1[%149] : memref<2xi32, #tpu.memory_space<smem>>
    %c0_i32 = arith.constant 0 : i32
    %151 = arith.cmpi eq, %150, %c0_i32 : i32
    %c1_i32 = arith.constant 1 : i32
    %152 = arith.addi %148, %c1_i32 : i32
    %153 = arith.index_cast %152 : i32 to index
    %154 = memref.load %arg1[%153] : memref<2xi32, #tpu.memory_space<smem>>
    %c0_i32_67 = arith.constant 0 : i32
    %155 = arith.cmpi eq, %154, %c0_i32_67 : i32
    %156 = arith.ori %151, %155 : i1
    %cst_68 = arith.constant 0.000000e+00 : f32
    %157 = vector.broadcast %cst_68 : f32 to vector<2x1x1xf32>
    %c0_69 = arith.constant 0 : index
    %c0_70 = arith.constant 0 : index
    %c0_71 = arith.constant 0 : index
    %158 = vector.load %arg13[%c0_69, %c0_70, %c0_71] : memref<2x1x1xf32, #tpu.memory_space<vmem>>, vector<2x1x1xf32>
    tpu.vector_store %arg13[%c0_69, %c0_70, %c0_71], %157 {strides = array<i32>} : memref<2x1x1xf32, #tpu.memory_space<vmem>>, vector<2x1x1xf32>,
    %159 = arith.extui %156 : i1 to i32
    %c0_i32_72 = arith.constant 0 : i32
    %160 = arith.cmpi ne, %159, %c0_i32_72 : i32
    scf.if %160 {
      %cst_86 = arith.constant 5.000000e-01 : f32
      %182 = vector.broadcast %cst_86 : f32 to vector<2x2x8xf32>
      %183 = arith.mulf %182, %118 : vector<2x2x8xf32>
      %184 = arith.subf %122, %121 : vector<2x2x8xf32>
      %cst_87 = arith.constant 0.000000e+00 : f32
      %185 = vector.broadcast %cst_87 : f32 to vector<2x2x8xf32>
      %186 = arith.subf %185, %183 : vector<2x2x8xf32>
      %187 = math.exp %186 : vector<2x2x8xf32>
      %cst_88 = arith.constant 0.0166666675 : f32
      %188 = vector.broadcast %cst_88 : f32 to vector<2x2x8xf32>
      %189 = arith.addf %184, %188 : vector<2x2x8xf32>
      %190 = arith.mulf %187, %189 : vector<2x2x8xf32>
      %cst_89 = arith.constant 4.471500e-02 : f32
      %191 = vector.broadcast %cst_89 : f32 to vector<2x2x8xf32>
      %192 = arith.mulf %191, %190 : vector<2x2x8xf32>
      %193 = arith.mulf %192, %190 : vector<2x2x8xf32>
      %194 = arith.mulf %193, %190 : vector<2x2x8xf32>
      %195 = arith.addf %190, %194 : vector<2x2x8xf32>
      %cst_90 = arith.constant 0.797884583 : f32
      %196 = vector.broadcast %cst_90 : f32 to vector<2x2x8xf32>
      %197 = arith.mulf %196, %195 : vector<2x2x8xf32>
      %198 = math.tanh %197 : vector<2x2x8xf32>
      %cst_91 = arith.constant 1.000000e+00 : f32
      %199 = vector.broadcast %cst_91 : f32 to vector<2x2x8xf32>
      %200 = arith.addf %199, %198 : vector<2x2x8xf32>
      %cst_92 = arith.constant 5.000000e-01 : f32
      %201 = vector.broadcast %cst_92 : f32 to vector<2x2x8xf32>
      %202 = arith.mulf %201, %200 : vector<2x2x8xf32>
      %cst_93 = arith.constant 0.0166666675 : f32
      %203 = vector.broadcast %cst_93 : f32 to vector<2x2x8xf32>
      %204 = arith.subf %184, %203 : vector<2x2x8xf32>
      %205 = arith.mulf %187, %204 : vector<2x2x8xf32>
      %cst_94 = arith.constant 4.471500e-02 : f32
      %206 = vector.broadcast %cst_94 : f32 to vector<2x2x8xf32>
      %207 = arith.mulf %206, %205 : vector<2x2x8xf32>
      %208 = arith.mulf %207, %205 : vector<2x2x8xf32>
      %209 = arith.mulf %208, %205 : vector<2x2x8xf32>
      %210 = arith.addf %205, %209 : vector<2x2x8xf32>
      %cst_95 = arith.constant 0.797884583 : f32
      %211 = vector.broadcast %cst_95 : f32 to vector<2x2x8xf32>
      %212 = arith.mulf %211, %210 : vector<2x2x8xf32>
      %213 = math.tanh %212 : vector<2x2x8xf32>
      %cst_96 = arith.constant 1.000000e+00 : f32
      %214 = vector.broadcast %cst_96 : f32 to vector<2x2x8xf32>
      %215 = arith.addf %214, %213 : vector<2x2x8xf32>
      %cst_97 = arith.constant 5.000000e-01 : f32
      %216 = vector.broadcast %cst_97 : f32 to vector<2x2x8xf32>
      %217 = arith.mulf %216, %215 : vector<2x2x8xf32>
      %cst_98 = arith.constant 9.99999996E-13 : f32
      %218 = vector.broadcast %cst_98 : f32 to vector<2x2x8xf32>
      %219 = arith.maximumf %202, %218 : vector<2x2x8xf32>
      %220 = math.log %219 : vector<2x2x8xf32>
      %cst_99 = arith.constant 1.000000e+00 : f32
      %221 = vector.broadcast %cst_99 : f32 to vector<2x2x8xf32>
      %222 = arith.subf %221, %217 : vector<2x2x8xf32>
      %cst_100 = arith.constant 9.99999996E-13 : f32
      %223 = vector.broadcast %cst_100 : f32 to vector<2x2x8xf32>
      %224 = arith.maximumf %222, %223 : vector<2x2x8xf32>
      %225 = math.log %224 : vector<2x2x8xf32>
      %226 = arith.subf %202, %217 : vector<2x2x8xf32>
      %cst_101 = arith.constant -9.990000e-01 : f32
      %227 = vector.broadcast %cst_101 : f32 to vector<2x2x8xf32>
      %228 = arith.cmpf olt, %122, %227 : vector<2x2x8xf32>
      %cst_102 = arith.constant 9.990000e-01 : f32
      %229 = vector.broadcast %cst_102 : f32 to vector<2x2x8xf32>
      %230 = arith.cmpf ogt, %122, %229 : vector<2x2x8xf32>
      %cst_103 = arith.constant 9.99999996E-13 : f32
      %231 = vector.broadcast %cst_103 : f32 to vector<2x2x8xf32>
      %232 = arith.maximumf %226, %231 : vector<2x2x8xf32>
      %233 = math.log %232 : vector<2x2x8xf32>
      %234 = arith.select %230, %225, %233 : vector<2x2x8xi1>, vector<2x2x8xf32>
      %235 = arith.select %228, %220, %234 : vector<2x2x8xi1>, vector<2x2x8xf32>
      %cst_104 = arith.constant 0.000000e+00 : f32
      %236 = vector.broadcast %cst_104 : f32 to vector<2x2x8xf32>
      %237 = arith.subf %236, %235 : vector<2x2x8xf32>
      %cst_105 = arith.constant dense<0.000000e+00> : vector<2x2xf32>
      %238 = vector.multi_reduction <add>, %237, %cst_105 [2] : vector<2x2x8xf32> to vector<2x2xf32>
      %239 = vector.shape_cast %238 : vector<2x2xf32> to vector<2x2x1xf32>
      %cst_106 = arith.constant dense<0.000000e+00> : vector<2x1xf32>
      %240 = vector.multi_reduction <add>, %239, %cst_106 [1] : vector<2x2x1xf32> to vector<2x1xf32>
      %241 = vector.shape_cast %240 : vector<2x1xf32> to vector<2x1x1xf32>
      %cst_107 = arith.constant 0.0901684388 : f32
      %242 = vector.broadcast %cst_107 : f32 to vector<2x1x1xf32>
      %243 = arith.mulf %241, %242 : vector<2x1x1xf32>
      %c0_108 = arith.constant 0 : index
      %c0_109 = arith.constant 0 : index
      %c0_110 = arith.constant 0 : index
      %244 = vector.load %arg13[%c0_108, %c0_109, %c0_110] : memref<2x1x1xf32, #tpu.memory_space<vmem>>, vector<2x1x1xf32>
      tpu.vector_store %arg13[%c0_108, %c0_109, %c0_110], %243 {strides = array<i32>} : memref<2x1x1xf32, #tpu.memory_space<vmem>>, vector<2x1x1xf32>,
    } else {
    }
    %cst_73 = arith.constant 0.000000e+00 : f32
    %161 = vector.broadcast %cst_73 : f32 to vector<2x1x1xf32>
    %162 = arith.cmpf oeq, %124, %161 : vector<2x1x1xf32>
    %c0_74 = arith.constant 0 : index
    %c0_75 = arith.constant 0 : index
    %c0_76 = arith.constant 0 : index
    %163 = vector.load %arg13[%c0_74, %c0_75, %c0_76] : memref<2x1x1xf32, #tpu.memory_space<vmem>>, vector<2x1x1xf32>
    %164 = arith.select %162, %163, %147 : vector<2x1x1xi1>, vector<2x1x1xf32>
    %cst_77 = arith.constant dense<0.000000e+00> : vector<2x1xf32>
    %165 = vector.multi_reduction <add>, %164, %cst_77 [2] : vector<2x1x1xf32> to vector<2x1xf32>
    %166 = vector.shape_cast %165 : vector<2x1xf32> to vector<2x1x1xf32>
    %cst_78 = arith.constant dense<0.000000e+00> : vector<2x1xf32>
    %167 = vector.multi_reduction <add>, %166, %cst_78 [1] : vector<2x1x1xf32> to vector<2x1xf32>
    %168 = vector.shape_cast %167 : vector<2x1xf32> to vector<2x1x1xf32>
    %cst_79 = arith.constant dense<0.000000e+00> : vector<1x1xf32>
    %169 = vector.multi_reduction <add>, %168, %cst_79 [0] : vector<2x1x1xf32> to vector<1x1xf32>
    %170 = vector.shape_cast %169 : vector<1x1xf32> to vector<1x1x1xf32>
    %171 = vector.shape_cast %170 : vector<1x1x1xf32> to vector<1x1xf32>
    %cst_80 = arith.constant 6.250000e-02 : f32
    %172 = vector.broadcast %cst_80 : f32 to vector<1x1xf32>
    %173 = arith.mulf %172, %33 : vector<1x1xf32>
    %cst_81 = arith.constant 0.166666672 : f32
    %174 = vector.broadcast %cst_81 : f32 to vector<1x1xf32>
    %175 = arith.mulf %174, %109 : vector<1x1xf32>
    %176 = arith.addf %173, %175 : vector<1x1xf32>
    %cst_82 = arith.constant 5.000000e-01 : f32
    %177 = vector.broadcast %cst_82 : f32 to vector<1x1xf32>
    %178 = arith.mulf %177, %171 : vector<1x1xf32>
    %179 = arith.addf %176, %178 : vector<1x1xf32>
    %180 = vector.shape_cast %179 : vector<1x1xf32> to vector<1x1x1xf32>
    %c0_83 = arith.constant 0 : index
    %c0_84 = arith.constant 0 : index
    %c0_85 = arith.constant 0 : index
    %181 = vector.load %arg12[%c0_83, %c0_84, %c0_85] : memref<1x1x1xf32, #tpu.memory_space<vmem>>, vector<1x1x1xf32>
    tpu.vector_store %arg12[%c0_83, %c0_84, %c0_85], %180 {strides = array<i32>} : memref<1x1x1xf32, #tpu.memory_space<vmem>>, vector<1x1x1xf32>,
    return
  }
  func.func @transform_0(%arg0: i32, %arg1: memref<2xi32, #tpu.memory_space<smem>>) -> (i32, i32, i32) {
    %c0_i32 = arith.constant 0 : i32
    %c0_i32_0 = arith.constant 0 : i32
    %c0_i32_1 = arith.constant 0 : i32
    return %arg0, %c0_i32, %c0_i32_0 : i32, i32, i32
  }
  func.func @transform_1(%arg0: i32, %arg1: memref<2xi32, #tpu.memory_space<smem>>) -> (i32, i32, i32) {
    %c0_i32 = arith.constant 0 : i32
    %c0_i32_0 = arith.constant 0 : i32
    %c0_i32_1 = arith.constant 0 : i32
    return %arg0, %c0_i32, %c0_i32_0 : i32, i32, i32
  }
  func.func @transform_2(%arg0: i32, %arg1: memref<2xi32, #tpu.memory_space<smem>>) -> (i32, i32) {
    %c0_i32 = arith.constant 0 : i32
    %c0_i32_0 = arith.constant 0 : i32
    %c0_i32_1 = arith.constant 0 : i32
    return %c0_i32, %c0_i32_0 : i32, i32
  }
  func.func @transform_3(%arg0: i32, %arg1: memref<2xi32, #tpu.memory_space<smem>>) -> (i32, i32, i32) {
    %c0_i32 = arith.constant 0 : i32
    %c0_i32_0 = arith.constant 0 : i32
    %c0_i32_1 = arith.constant 0 : i32
    return %arg0, %c0_i32, %c0_i32_0 : i32, i32, i32
  }
  func.func @transform_4(%arg0: i32, %arg1: memref<2xi32, #tpu.memory_space<smem>>) -> (i32, i32, i32) {
    %c0_i32 = arith.constant 0 : i32
    %c0_i32_0 = arith.constant 0 : i32
    %c0_i32_1 = arith.constant 0 : i32
    return %arg0, %c0_i32, %c0_i32_0 : i32, i32, i32
  }
  func.func @transform_5(%arg0: i32, %arg1: memref<2xi32, #tpu.memory_space<smem>>) -> (i32, i32, i32) {
    %c0_i32 = arith.constant 0 : i32
    %c0_i32_0 = arith.constant 0 : i32
    %c0_i32_1 = arith.constant 0 : i32
    return %arg0, %c0_i32, %c0_i32_0 : i32, i32, i32
  }
  func.func @transform_6(%arg0: i32, %arg1: memref<2xi32, #tpu.memory_space<smem>>) -> (i32, i32, i32) {
    %c0_i32 = arith.constant 0 : i32
    %c0_i32_0 = arith.constant 0 : i32
    %c0_i32_1 = arith.constant 0 : i32
    return %arg0, %c0_i32, %c0_i32_0 : i32, i32, i32
  }
  func.func @transform_7(%arg0: i32, %arg1: memref<2xi32, #tpu.memory_space<smem>>) -> (i32, i32, i32) {
    %c0_i32 = arith.constant 0 : i32
    %c0_i32_0 = arith.constant 0 : i32
    %c0_i32_1 = arith.constant 0 : i32
    return %arg0, %c0_i32, %c0_i32_0 : i32, i32, i32
  }
  func.func @transform_8(%arg0: i32, %arg1: memref<2xi32, #tpu.memory_space<smem>>) -> (i32, i32, i32) {
    %c0_i32 = arith.constant 0 : i32
    %c0_i32_0 = arith.constant 0 : i32
    %c0_i32_1 = arith.constant 0 : i32
    return %arg0, %c0_i32, %c0_i32_0 : i32, i32, i32
  }
  func.func @transform_9(%arg0: i32, %arg1: memref<2xi32, #tpu.memory_space<smem>>) -> (i32, i32, i32) {
    %c0_i32 = arith.constant 0 : i32
    %c0_i32_0 = arith.constant 0 : i32
    %c0_i32_1 = arith.constant 0 : i32
    return %arg0, %c0_i32, %c0_i32_0 : i32, i32, i32
  }
  func.func @transform_10(%arg0: i32, %arg1: memref<2xi32, #tpu.memory_space<smem>>) -> (i32, i32, i32) {
    %c0_i32 = arith.constant 0 : i32
    %c0_i32_0 = arith.constant 0 : i32
    %c0_i32_1 = arith.constant 0 : i32
    return %arg0, %c0_i32, %c0_i32_0 : i32, i32, i32
  }
}

</mosaic_0001>

<llo_original>
// kernel: tpu_custom_call.1
$region0: #{tpu_custom_call.1}
  #allocation0 [shape = 'u32[]', space=smem, size = 0x4, offset = 0x4, fixed_abs, tag = 'smem constant byte address 0x4 - core index']
  #allocation1 [shape = 'u32[144,128]{1,0:T(1,128)}', space=vmem, size = 0x12000, scoped, tag = 'internal scratch']
  #allocation2 [shape = 'f32[2,1,1]{2,1,0:T(1,128)}', space=vmem, size = 0x400, scoped, tag = 'scratch operand']
  #allocation3 [shape = 's32[1]{0}', space=sflag, size = 0x4, scoped, tag = 'scoped memory for tpu_custom_call.1']
  #allocation4 [shape = 'u8[512]{0}', space=smem, size = 0x200, scoped, tag = 'prefetched SMEM operand 0']
  %s0 = inlined_call_operand.hbm [shape: s32[2], index: 0, kind: input, shape index: {}]
  %s1 = inlined_call_operand.hbm [shape: f32[1,4,16], index: 1, kind: input, shape index: {}]
  %s2 = inlined_call_operand.hbm [shape: s32[1,1,16], index: 2, kind: input, shape index: {}]
  %s3 = inlined_call_operand.vmem [shape: f32[4,1], index: 3, kind: input, shape index: {}]
  %s4 = inlined_call_operand.vmem [shape: f32[2,8,16], index: 4, kind: input, shape index: {}]
  %s5 = inlined_call_operand.vmem [shape: f32[2,8,16], index: 5, kind: input, shape index: {}]
  %s6 = inlined_call_operand.vmem [shape: s32[2,8,2], index: 6, kind: input, shape index: {}]
  %s7 = inlined_call_operand.vmem [shape: f32[2,1,16], index: 7, kind: input, shape index: {}]
  %s8 = inlined_call_operand.vmem [shape: f32[2,8,16], index: 8, kind: input, shape index: {}]
  %s9 = inlined_call_operand.hbm [shape: f32[2,8,16], index: 9, kind: input, shape index: {}]
  %s10 = inlined_call_operand.hbm [shape: f32[2,8,8], index: 10, kind: input, shape index: {}]
  %s11 = inlined_call_operand.hbm [shape: f32[1,1,1], index: 11, kind: output, shape index: {}]
  %s12 = sld [smem:[#allocation0]]
  $region70: #{tpu_custom_call.1} parent=0
    _
  %s14 = ssub.s32 1, %s12
  %s15 = scalar_select 0, %s14, %s12
  %17 = dma.hbm_to_smem %s0, 16, [#allocation4], [#allocation3]
  %18 = dma.done [#allocation3], 16
  %19 = sfence
  $region1: #{tpu_custom_call.1} parent=0
    #allocation5 [shape = 'u8[2048]{0}', space=vmem, size = 0x800, scoped, tag = 'input window, operand 1, single buffered']
    #allocation6 [shape = 's32[1]{0}', space=sflag, size = 0x4, scoped, tag = 'scoped memory for tpu_custom_call.1']
    #allocation7 [shape = 's32[1]{0}', space=sflag, size = 0x4, scoped, tag = 'scoped memory for tpu_custom_call.1']
    #allocation8 [shape = 'u8[512]{0}', space=vmem, size = 0x400, scoped, tag = 'input window, operand 2, single buffered']
    #allocation9 [shape = 's32[1]{0}', space=sflag, size = 0x4, scoped, tag = 'scoped memory for tpu_custom_call.1']
    #allocation10 [shape = 'u8[8192]{0}', space=vmem, size = 0x2000, scoped, tag = 'input window, operand 9, single buffered']
    #allocation11 [shape = 'u8[8192]{0}', space=vmem, size = 0x2000, scoped, tag = 'input window, operand 10, single buffered']
    #allocation12 [shape = 's32[1]{0}', space=sflag, size = 0x4, scoped, tag = 'scoped memory for tpu_custom_call.1']
    #allocation13 [shape = 'u8[512]{0}', space=vmem, size = 0x400, scoped, tag = 'output window, operand 0, single buffered']
    %20 = vsyncpa [#allocation6], 0
    %21 = vsyncpa [#allocation9], 0
    %22 = vsyncpa [#allocation12], 0
    %23 = vsyncpa [#allocation7], 0
    // Predicated region
    $region2: #{tpu_custom_call.1} parent=1 // pred_check
      _
    $region3: #{tpu_custom_call.1} parent=1 // pred_check_branch
      %25 = sbr.rel (0) target = $region5
    $region4: #{tpu_custom_call.1} parent=1 // pred_region
      %s27 = ssub.s32 64, 64
      %28 = vsyncadd [#allocation6], %s27
      %s30 = sshll.u32 [#allocation5], 4
      %s31 = int_to_ptr.vmem [resolvable:$true] %s30
      %33 = dma.hbm_to_vmem [thread:$0]  %s1, 64, %s31, [#allocation6]
    $region5: #{tpu_custom_call.1} parent=1 // pred_fallthru
      _
    // Predicated region
    $region6: #{tpu_custom_call.1} parent=1 // pred_check
      _
    $region7: #{tpu_custom_call.1} parent=1 // pred_check_branch
      %35 = sbr.rel (0) target = $region9
    $region8: #{tpu_custom_call.1} parent=1 // pred_region
      %s37 = ssub.s32 16, 16
      %38 = vsyncadd [#allocation9], %s37
      %s40 = sshll.u32 [#allocation8], 4
      %s41 = int_to_ptr.vmem [resolvable:$true] %s40
      %43 = dma.hbm_to_vmem [thread:$0]  %s2, 16, %s41, [#allocation9]
    $region9: #{tpu_custom_call.1} parent=1 // pred_fallthru
      _
    // Predicated region
    $region10: #{tpu_custom_call.1} parent=1 // pred_check
      _
    $region11: #{tpu_custom_call.1} parent=1 // pred_check_branch
      %45 = sbr.rel (0) target = $region13
    $region12: #{tpu_custom_call.1} parent=1 // pred_region
      _
    $region13: #{tpu_custom_call.1} parent=1 // pred_fallthru
      _
    // Predicated region
    $region14: #{tpu_custom_call.1} parent=1 // pred_check
      _
    $region15: #{tpu_custom_call.1} parent=1 // pred_check_branch
      %47 = sbr.rel (0) target = $region17
    $region16: #{tpu_custom_call.1} parent=1 // pred_region
      _
    $region17: #{tpu_custom_call.1} parent=1 // pred_fallthru
      _
    // Predicated region
    $region18: #{tpu_custom_call.1} parent=1 // pred_check
      _
    $region19: #{tpu_custom_call.1} parent=1 // pred_check_branch
      %49 = sbr.rel (0) target = $region21
    $region20: #{tpu_custom_call.1} parent=1 // pred_region
      _
    $region21: #{tpu_custom_call.1} parent=1 // pred_fallthru
      _
    // Predicated region
    $region22: #{tpu_custom_call.1} parent=1 // pred_check
      _
    $region23: #{tpu_custom_call.1} parent=1 // pred_check_branch
      %51 = sbr.rel (0) target = $region25
    $region24: #{tpu_custom_call.1} parent=1 // pred_region
      _
    $region25: #{tpu_custom_call.1} parent=1 // pred_fallthru
      _
    // Predicated region
    $region26: #{tpu_custom_call.1} parent=1 // pred_check
      _
    $region27: #{tpu_custom_call.1} parent=1 // pred_check_branch
      %53 = sbr.rel (0) target = $region29
    $region28: #{tpu_custom_call.1} parent=1 // pred_region
      _
    $region29: #{tpu_custom_call.1} parent=1 // pred_fallthru
      _
    // Predicated region
    $region30: #{tpu_custom_call.1} parent=1 // pred_check
      _
    $region31: #{tpu_custom_call.1} parent=1 // pred_check_branch
      %55 = sbr.rel (0) target = $region33
    $region32: #{tpu_custom_call.1} parent=1 // pred_region
      _
    $region33: #{tpu_custom_call.1} parent=1 // pred_fallthru
      _
    // Predicated region
    $region34: #{tpu_custom_call.1} parent=1 // pred_check
      _
    $region35: #{tpu_custom_call.1} parent=1 // pred_check_branch
      %57 = sbr.rel (0) target = $region37
    $region36: #{tpu_custom_call.1} parent=1 // pred_region
      %s59 = ssub.s32 256, 256
      %60 = vsyncadd [#allocation9], %s59
      %s61 = sshll.u32 [#allocation10], 4
      %s62 = int_to_ptr.vmem [resolvable:$true] %s61
      %67 = dma.hbm_to_vmem [thread:$0]  %s9, 256, %s62, [#allocation9], 128, 128, 8
    $region37: #{tpu_custom_call.1} parent=1 // pred_fallthru
      _
    // Predicated region
    $region38: #{tpu_custom_call.1} parent=1 // pred_check
      _
    $region39: #{tpu_custom_call.1} parent=1 // pred_check_branch
      %69 = sbr.rel (0) target = $region41
    $region40: #{tpu_custom_call.1} parent=1 // pred_region
      %s71 = ssub.s32 256, 256
      %72 = vsyncadd [#allocation12], %s71
      %s73 = sshll.u32 [#allocation11], 4
      %s74 = int_to_ptr.vmem [resolvable:$true] %s73
      %79 = dma.hbm_to_vmem [thread:$0]  %s10, 256, %s74, [#allocation12], 128, 128, 8
    $region41: #{tpu_custom_call.1} parent=1 // pred_fallthru
      _
    // Predicated region
    $region42: #{tpu_custom_call.1} parent=1 // pred_check
      _
    $region43: #{tpu_custom_call.1} parent=1 // pred_check_branch
      %81 = sbr.rel (0) target = $region45
    $region44: #{tpu_custom_call.1} parent=1 // pred_region
      %82 = dma.done [#allocation6], 64
    $region45: #{tpu_custom_call.1} parent=1 // pred_fallthru
      _
    // Predicated region
    $region46: #{tpu_custom_call.1} parent=1 // pred_check
      _
    $region47: #{tpu_custom_call.1} parent=1 // pred_check_branch
      %84 = sbr.rel (0) target = $region49
    $region48: #{tpu_custom_call.1} parent=1 // pred_region
      %85 = dma.done [#allocation9], 16
    $region49: #{tpu_custom_call.1} parent=1 // pred_fallthru
      _
    // Predicated region
    $region50: #{tpu_custom_call.1} parent=1 // pred_check
      _
    $region51: #{tpu_custom_call.1} parent=1 // pred_check_branch
      %87 = sbr.rel (0) target = $region53
    $region52: #{tpu_custom_call.1} parent=1 // pred_region
      %88 = dma.done [#allocation9], 256
    $region53: #{tpu_custom_call.1} parent=1 // pred_fallthru
      _
    // Predicated region
    $region54: #{tpu_custom_call.1} parent=1 // pred_check
      _
    $region55: #{tpu_custom_call.1} parent=1 // pred_check_branch
      %90 = sbr.rel (0) target = $region57
    $region56: #{tpu_custom_call.1} parent=1 // pred_region
      %91 = dma.done [#allocation12], 256
    $region57: #{tpu_custom_call.1} parent=1 // pred_fallthru
      _
    %v92 = vld [vmem:[#allocation5] sm:$0xf]
    %v93 = vld [vmem:[#allocation8] sm:$0x1]
    %vm94 = vcmask 125952
    %v95 = vsel %vm94, %v92, -inf
    %v96 = vrot.slane %v95, 4
    %v97 = vmax.f32 %v95, %v96
    %v98 = vrot.slane %v97, 2
    %v99 = vmax.f32 %v97, %v98
    %v100 = vrot.slane %v99, 1
    %v101 = vmax.f32 %v99, %v100
    %v102 = vsub.f32 %v92, %v101
    %v103 = vmul.f32 %v102, 1.442695
    %v104 = vpow.pop %v103
    %v105 = vsel %vm94, %v104, 0.0
    %v106 = vrot.slane %v105, 4
    %v107 = vadd.f32 %v105, %v106
    %v108 = vrot.slane %v107, 2
    %v109 = vadd.f32 %v107, %v108
    %v110 = vrot.slane %v109, 1
    %v111 = vadd.f32 %v109, %v110
    %v112 = vlog2.pop %v111
    %v113 = vmul.f32 %v112, 0.6931472
    %v114 = vadd.f32 %v113, %v101
    %v115 = vlaneseq
    %v116 = vshrl.u32 %v115, 7
    %v117 = vlaneseq
    %v118 = vshrl.u32 %v117, 7
    %v119 = vsub.s32 0, %v118
    %v120 = vrot.slane %v93, %v119
    %vm121 = vcmp.eq.s32.totalorder %v116, %v120
    %v122 = vsel %vm121, 1, 0
    %v123 = vcvt.s32.f32 %v122
    %v124 = vmul.f32 %v92, %v123
    %v125 = vsel %vm94, %v124, 0.0
    %v126 = vrot.slane %v125, 4
    %v127 = vadd.f32 %v125, %v126
    %v128 = vrot.slane %v127, 2
    %v129 = vadd.f32 %v127, %v128
    %v130 = vrot.slane %v129, 1
    %v131 = vadd.f32 %v129, %v130
    %v132 = vld [vmem:[%s3] sm:$0xf]
    %134 = vset.pattern.permute.xlu0 0
    %135 = vperm.xlu0 %134, %v132
    %v136 = vpop.permute.xlu0 %135
    %v138 = vmul.f32 %v136, %v123
    %v139 = vsel %vm94, %v138, 0.0
    %v140 = vrot.slane %v139, 4
    %v141 = vadd.f32 %v139, %v140
    %v142 = vrot.slane %v141, 2
    %v143 = vadd.f32 %v141, %v142
    %v144 = vrot.slane %v143, 1
    %v145 = vadd.f32 %v143, %v144
    %v146 = vsub.f32 0.0, %v145
    %v147 = vsub.f32 %v131, %v114
    %v148 = vmul.f32 %v146, %v147
    %vm149 = vcmask 130048
    %v150 = vsel %vm149, %v148, 0.0
    %151 = vadd.xlane.f32.xlu0 %v150
    %v152 = vpop.xlane.xlu0 %151
    %v153 = vadd.f32 %v152, 0.0
    %v154 = vld [vmem:[%s7] sm:$0x1]
    %v155 = vld [vmem:[%s7 + $0x1] sm:$0x1]
    %v156 = vld [vmem:[%s6] sm:$0xff]
    %v157 = vld [vmem:[%s6 + $0x8] sm:$0xff]
    %v158 = vlaneseq
    %v159 = vand.u32 %v158, 127
    %vm160 = vcmp.lt.s32.totalorder %v159, 3
    %v161 = vsel %vm160, 1, 0
    %v162 = vcvt.s32.f32 %v161
    %v163 = vld [vmem:[%s4] sm:$0xff]
    %v164 = vld [vmem:[%s4 + $0x8] sm:$0xff]
    %165 = vset.pattern.permute.xlu0 0
    %166 = vperm.xlu0 %165, %v156
    %v167 = vpop.permute.xlu0 %166
    %168 = vset.pattern.permute.xlu0 0
    %169 = vperm.xlu0 %168, %v157
    %v170 = vpop.permute.xlu0 %169
    %vm171 = vcmp.eq.s32.totalorder %v159, %v167
    %vm172 = vcmp.eq.s32.totalorder %v159, %v170
    %v173 = vsel %vm171, 1, 0
    %v174 = vsel %vm172, 1, 0
    %v175 = vcvt.s32.f32 %v173
    %v176 = vcvt.s32.f32 %v174
    %v177 = vsub.f32 1.0, %v163
    %v178 = vsub.f32 1.0, %v164
    %v179 = vlog2.pop %v177
    %v180 = vmul.f32 %v179, 0.6931472
    %v181 = vlog2.pop %v178
    %v182 = vmul.f32 %v181, 0.6931472
    %v183 = vmax.f32 %v180, -100.0
    %v184 = vmax.f32 %v182, -100.0
    %v185 = vmul.f32 %v163, %v175
    %v186 = vmul.f32 %v164, %v176
    %v188 = vsel %vm149, 1.0, 0
    %v191 = vsel %vm149, %v185, 0
    %193 = vmatprep.subr.mxu0 0.0
    %194 = vmatpush1.xpose.msra.mxu0 %v191
    %195 = vmatprep.subr.mxu0 0.0
    %196 = vmatpush1.xpose.msra.mxu0 0.0
    %197 = vmatprep.subr.mxu0 0.0
    %198 = vmatpush1.xpose.msra.mxu0 0.0
    %199 = vmatprep.subr.mxu0 0.0
    %200 = vmatpush1.xpose.msra.mxu0 0.0
    %201 = vmatprep.subr.mxu0 0.0
    %202 = vmatpush1.xpose.msra.mxu0 0.0
    %203 = vmatprep.subr.mxu0 0.0
    %204 = vmatpush1.xpose.msra.mxu0 0.0
    %205 = vmatprep.subr.mxu0 0.0
    %206 = vmatpush1.xpose.msra.mxu0 0.0
    %207 = vmatprep.subr.mxu0 0.0
    %208 = vmatpush1.xpose.msra.mxu0 0.0
    %209 = vmatprep.subr.mxu0 0.0
    %210 = vmatpush1.xpose.msra.mxu0 0.0
    %211 = vmatprep.subr.mxu0 0.0
    %212 = vmatpush1.xpose.msra.mxu0 0.0
    %213 = vmatprep.subr.mxu0 0.0
    %214 = vmatpush1.xpose.msra.mxu0 0.0
    %215 = vmatprep.subr.mxu0 0.0
    %216 = vmatpush1.xpose.msra.mxu0 0.0
    %217 = vmatprep.subr.mxu0 0.0
    %218 = vmatpush1.xpose.msra.mxu0 0.0
    %219 = vmatprep.subr.mxu0 0.0
    %220 = vmatpush1.xpose.msra.mxu0 0.0
    %221 = vmatprep.subr.mxu0 0.0
    %222 = vmatpush1.xpose.msra.mxu0 0.0
    %223 = vmatprep.subr.mxu0 0.0
    %224 = vmatpush1.xpose.msra.mxu0 0.0
    %225 = vmatprep.subr.mxu0 0.0
    %226 = vmatpush1.xpose.msra.mxu0 0.0
    %227 = vmatprep.subr.mxu0 0.0
    %228 = vmatpush1.xpose.msra.mxu0 0.0
    %229 = vmatprep.subr.mxu0 0.0
    %230 = vmatpush1.xpose.msra.mxu0 0.0
    %231 = vmatprep.subr.mxu0 0.0
    %232 = vmatpush1.xpose.msra.mxu0 0.0
    %233 = vmatprep.subr.mxu0 0.0
    %234 = vmatpush1.xpose.msra.mxu0 0.0
    %235 = vmatprep.subr.mxu0 0.0
    %236 = vmatpush1.xpose.msra.mxu0 0.0
    %237 = vmatprep.subr.mxu0 0.0
    %238 = vmatpush1.xpose.msra.mxu0 0.0
    %239 = vmatprep.subr.mxu0 0.0
    %240 = vmatpush1.xpose.msra.mxu0 0.0
    %241 = vmatprep.subr.mxu0 0.0
    %242 = vmatpush1.xpose.msra.mxu0 0.0
    %243 = vmatprep.subr.mxu0 0.0
    %244 = vmatpush1.xpose.msra.mxu0 0.0
    %245 = vmatprep.subr.mxu0 0.0
    %246 = vmatpush1.xpose.msra.mxu0 0.0
    %247 = vmatprep.subr.mxu0 0.0
    %248 = vmatpush1.xpose.msra.mxu0 0.0
    %249 = vmatprep.subr.mxu0 0.0
    %250 = vmatpush1.xpose.msra.mxu0 0.0
    %251 = vmatprep.subr.mxu0 0.0
    %252 = vmatpush1.xpose.msra.mxu0 0.0
    %253 = vmatprep.subr.mxu0 0.0
    %254 = vmatpush1.xpose.msra.mxu0 0.0
    %255 = vmatprep.subr.mxu0 0.0
    %256 = vmatpush1.xpose.msra.mxu0 0.0
    %257 = vmatprep.mubr.f32.mxu0 0.0
    %258 = vmatmul.mubr.f32.gmra.mrb[0].mxu0 %v188
    %v259 = vpop.f32.mrb[0].mxu0
    %v260 = vadd.f32 0.0, %v259
    %v261 = vpop.f32.mrb[0].mxu0
    %262 = vdwg.mxu0
    %v264 = vsel %vm149, %v186, 0
    %266 = vmatprep.subr.mxu0 0.0
    %267 = vmatpush1.xpose.msra.mxu0 %v264
    %268 = vmatprep.subr.mxu0 0.0
    %269 = vmatpush1.xpose.msra.mxu0 0.0
    %270 = vmatprep.subr.mxu0 0.0
    %271 = vmatpush1.xpose.msra.mxu0 0.0
    %272 = vmatprep.subr.mxu0 0.0
    %273 = vmatpush1.xpose.msra.mxu0 0.0
    %274 = vmatprep.subr.mxu0 0.0
    %275 = vmatpush1.xpose.msra.mxu0 0.0
    %276 = vmatprep.subr.mxu0 0.0
    %277 = vmatpush1.xpose.msra.mxu0 0.0
    %278 = vmatprep.subr.mxu0 0.0
    %279 = vmatpush1.xpose.msra.mxu0 0.0
    %280 = vmatprep.subr.mxu0 0.0
    %281 = vmatpush1.xpose.msra.mxu0 0.0
    %282 = vmatprep.subr.mxu0 0.0
    %283 = vmatpush1.xpose.msra.mxu0 0.0
    %284 = vmatprep.subr.mxu0 0.0
    %285 = vmatpush1.xpose.msra.mxu0 0.0
    %286 = vmatprep.subr.mxu0 0.0
    %287 = vmatpush1.xpose.msra.mxu0 0.0
    %288 = vmatprep.subr.mxu0 0.0
    %289 = vmatpush1.xpose.msra.mxu0 0.0
    %290 = vmatprep.subr.mxu0 0.0
    %291 = vmatpush1.xpose.msra.mxu0 0.0
    %292 = vmatprep.subr.mxu0 0.0
    %293 = vmatpush1.xpose.msra.mxu0 0.0
    %294 = vmatprep.subr.mxu0 0.0
    %295 = vmatpush1.xpose.msra.mxu0 0.0
    %296 = vmatprep.subr.mxu0 0.0
    %297 = vmatpush1.xpose.msra.mxu0 0.0
    %298 = vmatprep.subr.mxu0 0.0
    %299 = vmatpush1.xpose.msra.mxu0 0.0
    %300 = vmatprep.subr.mxu0 0.0
    %301 = vmatpush1.xpose.msra.mxu0 0.0
    %302 = vmatprep.subr.mxu0 0.0
    %303 = vmatpush1.xpose.msra.mxu0 0.0
    %304 = vmatprep.subr.mxu0 0.0
    %305 = vmatpush1.xpose.msra.mxu0 0.0
    %306 = vmatprep.subr.mxu0 0.0
    %307 = vmatpush1.xpose.msra.mxu0 0.0
    %308 = vmatprep.subr.mxu0 0.0
    %309 = vmatpush1.xpose.msra.mxu0 0.0
    %310 = vmatprep.subr.mxu0 0.0
    %311 = vmatpush1.xpose.msra.mxu0 0.0
    %312 = vmatprep.subr.mxu0 0.0
    %313 = vmatpush1.xpose.msra.mxu0 0.0
    %314 = vmatprep.subr.mxu0 0.0
    %315 = vmatpush1.xpose.msra.mxu0 0.0
    %316 = vmatprep.subr.mxu0 0.0
    %317 = vmatpush1.xpose.msra.mxu0 0.0
    %318 = vmatprep.subr.mxu0 0.0
    %319 = vmatpush1.xpose.msra.mxu0 0.0
    %320 = vmatprep.subr.mxu0 0.0
    %321 = vmatpush1.xpose.msra.mxu0 0.0
    %322 = vmatprep.subr.mxu0 0.0
    %323 = vmatpush1.xpose.msra.mxu0 0.0
    %324 = vmatprep.subr.mxu0 0.0
    %325 = vmatpush1.xpose.msra.mxu0 0.0
    %326 = vmatprep.subr.mxu0 0.0
    %327 = vmatpush1.xpose.msra.mxu0 0.0
    %328 = vmatprep.subr.mxu0 0.0
    %329 = vmatpush1.xpose.msra.mxu0 0.0
    %330 = vmatprep.mubr.f32.mxu0 0.0
    %331 = vmatmul.mubr.f32.gmra.mrb[0].mxu0 %v188
    %v332 = vpop.f32.mrb[0].mxu0
    %v333 = vadd.f32 0.0, %v332
    %v334 = vpop.f32.mrb[0].mxu0
    %335 = vdwg.mxu0
    %v336 = vmul.f32 %v183, %v175
    %v337 = vmul.f32 %v184, %v176
    %v339 = vsel %vm149, %v336, 0
    %341 = vmatprep.subr.mxu0 0.0
    %342 = vmatpush1.xpose.msra.mxu0 %v339
    %343 = vmatprep.subr.mxu0 0.0
    %344 = vmatpush1.xpose.msra.mxu0 0.0
    %345 = vmatprep.subr.mxu0 0.0
    %346 = vmatpush1.xpose.msra.mxu0 0.0
    %347 = vmatprep.subr.mxu0 0.0
    %348 = vmatpush1.xpose.msra.mxu0 0.0
    %349 = vmatprep.subr.mxu0 0.0
    %350 = vmatpush1.xpose.msra.mxu0 0.0
    %351 = vmatprep.subr.mxu0 0.0
    %352 = vmatpush1.xpose.msra.mxu0 0.0
    %353 = vmatprep.subr.mxu0 0.0
    %354 = vmatpush1.xpose.msra.mxu0 0.0
    %355 = vmatprep.subr.mxu0 0.0
    %356 = vmatpush1.xpose.msra.mxu0 0.0
    %357 = vmatprep.subr.mxu0 0.0
    %358 = vmatpush1.xpose.msra.mxu0 0.0
    %359 = vmatprep.subr.mxu0 0.0
    %360 = vmatpush1.xpose.msra.mxu0 0.0
    %361 = vmatprep.subr.mxu0 0.0
    %362 = vmatpush1.xpose.msra.mxu0 0.0
    %363 = vmatprep.subr.mxu0 0.0
    %364 = vmatpush1.xpose.msra.mxu0 0.0
    %365 = vmatprep.subr.mxu0 0.0
    %366 = vmatpush1.xpose.msra.mxu0 0.0
    %367 = vmatprep.subr.mxu0 0.0
    %368 = vmatpush1.xpose.msra.mxu0 0.0
    %369 = vmatprep.subr.mxu0 0.0
    %370 = vmatpush1.xpose.msra.mxu0 0.0
    %371 = vmatprep.subr.mxu0 0.0
    %372 = vmatpush1.xpose.msra.mxu0 0.0
    %373 = vmatprep.subr.mxu0 0.0
    %374 = vmatpush1.xpose.msra.mxu0 0.0
    %375 = vmatprep.subr.mxu0 0.0
    %376 = vmatpush1.xpose.msra.mxu0 0.0
    %377 = vmatprep.subr.mxu0 0.0
    %378 = vmatpush1.xpose.msra.mxu0 0.0
    %379 = vmatprep.subr.mxu0 0.0
    %380 = vmatpush1.xpose.msra.mxu0 0.0
    %381 = vmatprep.subr.mxu0 0.0
    %382 = vmatpush1.xpose.msra.mxu0 0.0
    %383 = vmatprep.subr.mxu0 0.0
    %384 = vmatpush1.xpose.msra.mxu0 0.0
    %385 = vmatprep.subr.mxu0 0.0
    %386 = vmatpush1.xpose.msra.mxu0 0.0
    %387 = vmatprep.subr.mxu0 0.0
    %388 = vmatpush1.xpose.msra.mxu0 0.0
    %389 = vmatprep.subr.mxu0 0.0
    %390 = vmatpush1.xpose.msra.mxu0 0.0
    %391 = vmatprep.subr.mxu0 0.0
    %392 = vmatpush1.xpose.msra.mxu0 0.0
    %393 = vmatprep.subr.mxu0 0.0
    %394 = vmatpush1.xpose.msra.mxu0 0.0
    %395 = vmatprep.subr.mxu0 0.0
    %396 = vmatpush1.xpose.msra.mxu0 0.0
    %397 = vmatprep.subr.mxu0 0.0
    %398 = vmatpush1.xpose.msra.mxu0 0.0
    %399 = vmatprep.subr.mxu0 0.0
    %400 = vmatpush1.xpose.msra.mxu0 0.0
    %401 = vmatprep.subr.mxu0 0.0
    %402 = vmatpush1.xpose.msra.mxu0 0.0
    %403 = vmatprep.subr.mxu0 0.0
    %404 = vmatpush1.xpose.msra.mxu0 0.0
    %405 = vmatprep.mubr.f32.mxu0 0.0
    %406 = vmatmul.mubr.f32.gmra.mrb[0].mxu0 %v188
    %v407 = vpop.f32.mrb[0].mxu0
    %v408 = vadd.f32 0.0, %v407
    %v409 = vpop.f32.mrb[0].mxu0
    %410 = vdwg.mxu0
    %v412 = vsel %vm149, %v337, 0
    %414 = vmatprep.subr.mxu0 0.0
    %415 = vmatpush1.xpose.msra.mxu0 %v412
    %416 = vmatprep.subr.mxu0 0.0
    %417 = vmatpush1.xpose.msra.mxu0 0.0
    %418 = vmatprep.subr.mxu0 0.0
    %419 = vmatpush1.xpose.msra.mxu0 0.0
    %420 = vmatprep.subr.mxu0 0.0
    %421 = vmatpush1.xpose.msra.mxu0 0.0
    %422 = vmatprep.subr.mxu0 0.0
    %423 = vmatpush1.xpose.msra.mxu0 0.0
    %424 = vmatprep.subr.mxu0 0.0
    %425 = vmatpush1.xpose.msra.mxu0 0.0
    %426 = vmatprep.subr.mxu0 0.0
    %427 = vmatpush1.xpose.msra.mxu0 0.0
    %428 = vmatprep.subr.mxu0 0.0
    %429 = vmatpush1.xpose.msra.mxu0 0.0
    %430 = vmatprep.subr.mxu0 0.0
    %431 = vmatpush1.xpose.msra.mxu0 0.0
    %432 = vmatprep.subr.mxu0 0.0
    %433 = vmatpush1.xpose.msra.mxu0 0.0
    %434 = vmatprep.subr.mxu0 0.0
    %435 = vmatpush1.xpose.msra.mxu0 0.0
    %436 = vmatprep.subr.mxu0 0.0
    %437 = vmatpush1.xpose.msra.mxu0 0.0
    %438 = vmatprep.subr.mxu0 0.0
    %439 = vmatpush1.xpose.msra.mxu0 0.0
    %440 = vmatprep.subr.mxu0 0.0
    %441 = vmatpush1.xpose.msra.mxu0 0.0
    %442 = vmatprep.subr.mxu0 0.0
    %443 = vmatpush1.xpose.msra.mxu0 0.0
    %444 = vmatprep.subr.mxu0 0.0
    %445 = vmatpush1.xpose.msra.mxu0 0.0
    %446 = vmatprep.subr.mxu0 0.0
    %447 = vmatpush1.xpose.msra.mxu0 0.0
    %448 = vmatprep.subr.mxu0 0.0
    %449 = vmatpush1.xpose.msra.mxu0 0.0
    %450 = vmatprep.subr.mxu0 0.0
    %451 = vmatpush1.xpose.msra.mxu0 0.0
    %452 = vmatprep.subr.mxu0 0.0
    %453 = vmatpush1.xpose.msra.mxu0 0.0
    %454 = vmatprep.subr.mxu0 0.0
    %455 = vmatpush1.xpose.msra.mxu0 0.0
    %456 = vmatprep.subr.mxu0 0.0
    %457 = vmatpush1.xpose.msra.mxu0 0.0
    %458 = vmatprep.subr.mxu0 0.0
    %459 = vmatpush1.xpose.msra.mxu0 0.0
    %460 = vmatprep.subr.mxu0 0.0
    %461 = vmatpush1.xpose.msra.mxu0 0.0
    %462 = vmatprep.subr.mxu0 0.0
    %463 = vmatpush1.xpose.msra.mxu0 0.0
    %464 = vmatprep.subr.mxu0 0.0
    %465 = vmatpush1.xpose.msra.mxu0 0.0
    %466 = vmatprep.subr.mxu0 0.0
    %467 = vmatpush1.xpose.msra.mxu0 0.0
    %468 = vmatprep.subr.mxu0 0.0
    %469 = vmatpush1.xpose.msra.mxu0 0.0
    %470 = vmatprep.subr.mxu0 0.0
    %471 = vmatpush1.xpose.msra.mxu0 0.0
    %472 = vmatprep.subr.mxu0 0.0
    %473 = vmatpush1.xpose.msra.mxu0 0.0
    %474 = vmatprep.subr.mxu0 0.0
    %475 = vmatpush1.xpose.msra.mxu0 0.0
    %476 = vmatprep.subr.mxu0 0.0
    %477 = vmatpush1.xpose.msra.mxu0 0.0
    %478 = vmatprep.mubr.f32.mxu0 0.0
    %479 = vmatmul.mubr.f32.gmra.mrb[0].mxu0 %v188
    %v480 = vpop.f32.mrb[0].mxu0
    %v481 = vadd.f32 0.0, %v480
    %v482 = vpop.f32.mrb[0].mxu0
    %483 = vdwg.mxu0
    %v485 = vsel %vm149, %v154, 0
    %v488 = vsel %vm149, %v175, 0
    %490 = vmatprep.subr.mxu0 0.0
    %491 = vmatpush1.xpose.msra.mxu0 %v488
    %492 = vmatprep.subr.mxu0 0.0
    %493 = vmatpush1.xpose.msra.mxu0 0.0
    %494 = vmatprep.subr.mxu0 0.0
    %495 = vmatpush1.xpose.msra.mxu0 0.0
    %496 = vmatprep.subr.mxu0 0.0
    %497 = vmatpush1.xpose.msra.mxu0 0.0
    %498 = vmatprep.subr.mxu0 0.0
    %499 = vmatpush1.xpose.msra.mxu0 0.0
    %500 = vmatprep.subr.mxu0 0.0
    %501 = vmatpush1.xpose.msra.mxu0 0.0
    %502 = vmatprep.subr.mxu0 0.0
    %503 = vmatpush1.xpose.msra.mxu0 0.0
    %504 = vmatprep.subr.mxu0 0.0
    %505 = vmatpush1.xpose.msra.mxu0 0.0
    %506 = vmatprep.subr.mxu0 0.0
    %507 = vmatpush1.xpose.msra.mxu0 0.0
    %508 = vmatprep.subr.mxu0 0.0
    %509 = vmatpush1.xpose.msra.mxu0 0.0
    %510 = vmatprep.subr.mxu0 0.0
    %511 = vmatpush1.xpose.msra.mxu0 0.0
    %512 = vmatprep.subr.mxu0 0.0
    %513 = vmatpush1.xpose.msra.mxu0 0.0
    %514 = vmatprep.subr.mxu0 0.0
    %515 = vmatpush1.xpose.msra.mxu0 0.0
    %516 = vmatprep.subr.mxu0 0.0
    %517 = vmatpush1.xpose.msra.mxu0 0.0
    %518 = vmatprep.subr.mxu0 0.0
    %519 = vmatpush1.xpose.msra.mxu0 0.0
    %520 = vmatprep.subr.mxu0 0.0
    %521 = vmatpush1.xpose.msra.mxu0 0.0
    %522 = vmatprep.subr.mxu0 0.0
    %523 = vmatpush1.xpose.msra.mxu0 0.0
    %524 = vmatprep.subr.mxu0 0.0
    %525 = vmatpush1.xpose.msra.mxu0 0.0
    %526 = vmatprep.subr.mxu0 0.0
    %527 = vmatpush1.xpose.msra.mxu0 0.0
    %528 = vmatprep.subr.mxu0 0.0
    %529 = vmatpush1.xpose.msra.mxu0 0.0
    %530 = vmatprep.subr.mxu0 0.0
    %531 = vmatpush1.xpose.msra.mxu0 0.0
    %532 = vmatprep.subr.mxu0 0.0
    %533 = vmatpush1.xpose.msra.mxu0 0.0
    %534 = vmatprep.subr.mxu0 0.0
    %535 = vmatpush1.xpose.msra.mxu0 0.0
    %536 = vmatprep.subr.mxu0 0.0
    %537 = vmatpush1.xpose.msra.mxu0 0.0
    %538 = vmatprep.subr.mxu0 0.0
    %539 = vmatpush1.xpose.msra.mxu0 0.0
    %540 = vmatprep.subr.mxu0 0.0
    %541 = vmatpush1.xpose.msra.mxu0 0.0
    %542 = vmatprep.subr.mxu0 0.0
    %543 = vmatpush1.xpose.msra.mxu0 0.0
    %544 = vmatprep.subr.mxu0 0.0
    %545 = vmatpush1.xpose.msra.mxu0 0.0
    %546 = vmatprep.subr.mxu0 0.0
    %547 = vmatpush1.xpose.msra.mxu0 0.0
    %548 = vmatprep.subr.mxu0 0.0
    %549 = vmatpush1.xpose.msra.mxu0 0.0
    %550 = vmatprep.subr.mxu0 0.0
    %551 = vmatpush1.xpose.msra.mxu0 0.0
    %552 = vmatprep.subr.mxu0 0.0
    %553 = vmatpush1.xpose.msra.mxu0 0.0
    %554 = vmatprep.mubr.f32.mxu0 0.0
    %555 = vmatmul.mubr.f32.gmra.mrb[0].mxu0 %v485
    %v556 = vpop.f32.mrb[0].mxu0
    %v557 = vadd.f32 0.0, %v556
    %v558 = vpop.f32.mrb[0].mxu0
    %559 = vdwg.mxu0
    %v561 = vsel %vm149, %v155, 0
    %v564 = vsel %vm149, %v176, 0
    %566 = vmatprep.subr.mxu0 0.0
    %567 = vmatpush1.xpose.msra.mxu0 %v564
    %568 = vmatprep.subr.mxu0 0.0
    %569 = vmatpush1.xpose.msra.mxu0 0.0
    %570 = vmatprep.subr.mxu0 0.0
    %571 = vmatpush1.xpose.msra.mxu0 0.0
    %572 = vmatprep.subr.mxu0 0.0
    %573 = vmatpush1.xpose.msra.mxu0 0.0
    %574 = vmatprep.subr.mxu0 0.0
    %575 = vmatpush1.xpose.msra.mxu0 0.0
    %576 = vmatprep.subr.mxu0 0.0
    %577 = vmatpush1.xpose.msra.mxu0 0.0
    %578 = vmatprep.subr.mxu0 0.0
    %579 = vmatpush1.xpose.msra.mxu0 0.0
    %580 = vmatprep.subr.mxu0 0.0
    %581 = vmatpush1.xpose.msra.mxu0 0.0
    %582 = vmatprep.subr.mxu0 0.0
    %583 = vmatpush1.xpose.msra.mxu0 0.0
    %584 = vmatprep.subr.mxu0 0.0
    %585 = vmatpush1.xpose.msra.mxu0 0.0
    %586 = vmatprep.subr.mxu0 0.0
    %587 = vmatpush1.xpose.msra.mxu0 0.0
    %588 = vmatprep.subr.mxu0 0.0
    %589 = vmatpush1.xpose.msra.mxu0 0.0
    %590 = vmatprep.subr.mxu0 0.0
    %591 = vmatpush1.xpose.msra.mxu0 0.0
    %592 = vmatprep.subr.mxu0 0.0
    %593 = vmatpush1.xpose.msra.mxu0 0.0
    %594 = vmatprep.subr.mxu0 0.0
    %595 = vmatpush1.xpose.msra.mxu0 0.0
    %596 = vmatprep.subr.mxu0 0.0
    %597 = vmatpush1.xpose.msra.mxu0 0.0
    %598 = vmatprep.subr.mxu0 0.0
    %599 = vmatpush1.xpose.msra.mxu0 0.0
    %600 = vmatprep.subr.mxu0 0.0
    %601 = vmatpush1.xpose.msra.mxu0 0.0
    %602 = vmatprep.subr.mxu0 0.0
    %603 = vmatpush1.xpose.msra.mxu0 0.0
    %604 = vmatprep.subr.mxu0 0.0
    %605 = vmatpush1.xpose.msra.mxu0 0.0
    %606 = vmatprep.subr.mxu0 0.0
    %607 = vmatpush1.xpose.msra.mxu0 0.0
    %608 = vmatprep.subr.mxu0 0.0
    %609 = vmatpush1.xpose.msra.mxu0 0.0
    %610 = vmatprep.subr.mxu0 0.0
    %611 = vmatpush1.xpose.msra.mxu0 0.0
    %612 = vmatprep.subr.mxu0 0.0
    %613 = vmatpush1.xpose.msra.mxu0 0.0
    %614 = vmatprep.subr.mxu0 0.0
    %615 = vmatpush1.xpose.msra.mxu0 0.0
    %616 = vmatprep.subr.mxu0 0.0
    %617 = vmatpush1.xpose.msra.mxu0 0.0
    %618 = vmatprep.subr.mxu0 0.0
    %619 = vmatpush1.xpose.msra.mxu0 0.0
    %620 = vmatprep.subr.mxu0 0.0
    %621 = vmatpush1.xpose.msra.mxu0 0.0
    %622 = vmatprep.subr.mxu0 0.0
    %623 = vmatpush1.xpose.msra.mxu0 0.0
    %624 = vmatprep.subr.mxu0 0.0
    %625 = vmatpush1.xpose.msra.mxu0 0.0
    %626 = vmatprep.subr.mxu0 0.0
    %627 = vmatpush1.xpose.msra.mxu0 0.0
    %628 = vmatprep.subr.mxu0 0.0
    %629 = vmatpush1.xpose.msra.mxu0 0.0
    %630 = vmatprep.mubr.f32.mxu0 0.0
    %631 = vmatmul.mubr.f32.gmra.mrb[0].mxu0 %v561
    %v632 = vpop.f32.mrb[0].mxu0
    %v633 = vadd.f32 0.0, %v632
    %v634 = vpop.f32.mrb[0].mxu0
    %635 = vdwg.mxu0
    %v636 = vlog2.pop %v260
    %v637 = vmul.f32 %v636, 0.6931472
    %v638 = vlog2.pop %v333
    %v639 = vmul.f32 %v638, 0.6931472
    %v640 = vmax.f32 %v637, -100.0
    %v641 = vmax.f32 %v639, -100.0
    %v642 = vsub.f32 %v640, %v408
    %v643 = vsub.f32 %v641, %v481
    %v644 = vmul.f32 %v642, %v557
    %v645 = vmul.f32 %v643, %v633
    %v647 = vsel %vm149, %v183, 0
    %649 = vmatprep.subr.mxu0 0.0
    %650 = vmatpush1.xpose.msra.mxu0 %v647
    %651 = vmatprep.subr.mxu0 0.0
    %652 = vmatpush1.xpose.msra.mxu0 0.0
    %653 = vmatprep.subr.mxu0 0.0
    %654 = vmatpush1.xpose.msra.mxu0 0.0
    %655 = vmatprep.subr.mxu0 0.0
    %656 = vmatpush1.xpose.msra.mxu0 0.0
    %657 = vmatprep.subr.mxu0 0.0
    %658 = vmatpush1.xpose.msra.mxu0 0.0
    %659 = vmatprep.subr.mxu0 0.0
    %660 = vmatpush1.xpose.msra.mxu0 0.0
    %661 = vmatprep.subr.mxu0 0.0
    %662 = vmatpush1.xpose.msra.mxu0 0.0
    %663 = vmatprep.subr.mxu0 0.0
    %664 = vmatpush1.xpose.msra.mxu0 0.0
    %665 = vmatprep.subr.mxu0 0.0
    %666 = vmatpush1.xpose.msra.mxu0 0.0
    %667 = vmatprep.subr.mxu0 0.0
    %668 = vmatpush1.xpose.msra.mxu0 0.0
    %669 = vmatprep.subr.mxu0 0.0
    %670 = vmatpush1.xpose.msra.mxu0 0.0
    %671 = vmatprep.subr.mxu0 0.0
    %672 = vmatpush1.xpose.msra.mxu0 0.0
    %673 = vmatprep.subr.mxu0 0.0
    %674 = vmatpush1.xpose.msra.mxu0 0.0
    %675 = vmatprep.subr.mxu0 0.0
    %676 = vmatpush1.xpose.msra.mxu0 0.0
    %677 = vmatprep.subr.mxu0 0.0
    %678 = vmatpush1.xpose.msra.mxu0 0.0
    %679 = vmatprep.subr.mxu0 0.0
    %680 = vmatpush1.xpose.msra.mxu0 0.0
    %681 = vmatprep.subr.mxu0 0.0
    %682 = vmatpush1.xpose.msra.mxu0 0.0
    %683 = vmatprep.subr.mxu0 0.0
    %684 = vmatpush1.xpose.msra.mxu0 0.0
    %685 = vmatprep.subr.mxu0 0.0
    %686 = vmatpush1.xpose.msra.mxu0 0.0
    %687 = vmatprep.subr.mxu0 0.0
    %688 = vmatpush1.xpose.msra.mxu0 0.0
    %689 = vmatprep.subr.mxu0 0.0
    %690 = vmatpush1.xpose.msra.mxu0 0.0
    %691 = vmatprep.subr.mxu0 0.0
    %692 = vmatpush1.xpose.msra.mxu0 0.0
    %693 = vmatprep.subr.mxu0 0.0
    %694 = vmatpush1.xpose.msra.mxu0 0.0
    %695 = vmatprep.subr.mxu0 0.0
    %696 = vmatpush1.xpose.msra.mxu0 0.0
    %697 = vmatprep.subr.mxu0 0.0
    %698 = vmatpush1.xpose.msra.mxu0 0.0
    %699 = vmatprep.subr.mxu0 0.0
    %700 = vmatpush1.xpose.msra.mxu0 0.0
    %701 = vmatprep.subr.mxu0 0.0
    %702 = vmatpush1.xpose.msra.mxu0 0.0
    %703 = vmatprep.subr.mxu0 0.0
    %704 = vmatpush1.xpose.msra.mxu0 0.0
    %705 = vmatprep.subr.mxu0 0.0
    %706 = vmatpush1.xpose.msra.mxu0 0.0
    %707 = vmatprep.subr.mxu0 0.0
    %708 = vmatpush1.xpose.msra.mxu0 0.0
    %709 = vmatprep.subr.mxu0 0.0
    %710 = vmatpush1.xpose.msra.mxu0 0.0
    %711 = vmatprep.subr.mxu0 0.0
    %712 = vmatpush1.xpose.msra.mxu0 0.0
    %713 = vmatprep.mubr.f32.mxu0 0.0
    %714 = vmatmul.mubr.f32.gmra.mrb[0].mxu0 %v485
    %v715 = vpop.f32.mrb[0].mxu0
    %v716 = vadd.f32 %v644, %v715
    %v717 = vpop.f32.mrb[0].mxu0
    %718 = vdwg.mxu0
    %v720 = vsel %vm149, %v184, 0
    %722 = vmatprep.subr.mxu0 0.0
    %723 = vmatpush1.xpose.msra.mxu0 %v720
    %724 = vmatprep.subr.mxu0 0.0
    %725 = vmatpush1.xpose.msra.mxu0 0.0
    %726 = vmatprep.subr.mxu0 0.0
    %727 = vmatpush1.xpose.msra.mxu0 0.0
    %728 = vmatprep.subr.mxu0 0.0
    %729 = vmatpush1.xpose.msra.mxu0 0.0
    %730 = vmatprep.subr.mxu0 0.0
    %731 = vmatpush1.xpose.msra.mxu0 0.0
    %732 = vmatprep.subr.mxu0 0.0
    %733 = vmatpush1.xpose.msra.mxu0 0.0
    %734 = vmatprep.subr.mxu0 0.0
    %735 = vmatpush1.xpose.msra.mxu0 0.0
    %736 = vmatprep.subr.mxu0 0.0
    %737 = vmatpush1.xpose.msra.mxu0 0.0
    %738 = vmatprep.subr.mxu0 0.0
    %739 = vmatpush1.xpose.msra.mxu0 0.0
    %740 = vmatprep.subr.mxu0 0.0
    %741 = vmatpush1.xpose.msra.mxu0 0.0
    %742 = vmatprep.subr.mxu0 0.0
    %743 = vmatpush1.xpose.msra.mxu0 0.0
    %744 = vmatprep.subr.mxu0 0.0
    %745 = vmatpush1.xpose.msra.mxu0 0.0
    %746 = vmatprep.subr.mxu0 0.0
    %747 = vmatpush1.xpose.msra.mxu0 0.0
    %748 = vmatprep.subr.mxu0 0.0
    %749 = vmatpush1.xpose.msra.mxu0 0.0
    %750 = vmatprep.subr.mxu0 0.0
    %751 = vmatpush1.xpose.msra.mxu0 0.0
    %752 = vmatprep.subr.mxu0 0.0
    %753 = vmatpush1.xpose.msra.mxu0 0.0
    %754 = vmatprep.subr.mxu0 0.0
    %755 = vmatpush1.xpose.msra.mxu0 0.0
    %756 = vmatprep.subr.mxu0 0.0
    %757 = vmatpush1.xpose.msra.mxu0 0.0
    %758 = vmatprep.subr.mxu0 0.0
    %759 = vmatpush1.xpose.msra.mxu0 0.0
    %760 = vmatprep.subr.mxu0 0.0
    %761 = vmatpush1.xpose.msra.mxu0 0.0
    %762 = vmatprep.subr.mxu0 0.0
    %763 = vmatpush1.xpose.msra.mxu0 0.0
    %764 = vmatprep.subr.mxu0 0.0
    %765 = vmatpush1.xpose.msra.mxu0 0.0
    %766 = vmatprep.subr.mxu0 0.0
    %767 = vmatpush1.xpose.msra.mxu0 0.0
    %768 = vmatprep.subr.mxu0 0.0
    %769 = vmatpush1.xpose.msra.mxu0 0.0
    %770 = vmatprep.subr.mxu0 0.0
    %771 = vmatpush1.xpose.msra.mxu0 0.0
    %772 = vmatprep.subr.mxu0 0.0
    %773 = vmatpush1.xpose.msra.mxu0 0.0
    %774 = vmatprep.subr.mxu0 0.0
    %775 = vmatpush1.xpose.msra.mxu0 0.0
    %776 = vmatprep.subr.mxu0 0.0
    %777 = vmatpush1.xpose.msra.mxu0 0.0
    %778 = vmatprep.subr.mxu0 0.0
    %779 = vmatpush1.xpose.msra.mxu0 0.0
    %780 = vmatprep.subr.mxu0 0.0
    %781 = vmatpush1.xpose.msra.mxu0 0.0
    %782 = vmatprep.subr.mxu0 0.0
    %783 = vmatpush1.xpose.msra.mxu0 0.0
    %784 = vmatprep.subr.mxu0 0.0
    %785 = vmatpush1.xpose.msra.mxu0 0.0
    %786 = vmatprep.mubr.f32.mxu0 0.0
    %787 = vmatmul.mubr.f32.gmra.mrb[0].mxu0 %v561
    %v788 = vpop.f32.mrb[0].mxu0
    %v789 = vadd.f32 %v645, %v788
    %v790 = vpop.f32.mrb[0].mxu0
    %791 = vdwg.mxu0
    %v792 = vmul.f32 %v716, %v162
    %v793 = vmul.f32 %v789, %v162
    %vm794 = vcmask 57344
    %v795 = vsel %vm794, %v792, 0.0
    %796 = vadd.xlane.f32.xlu0 %v795
    %v797 = vpop.xlane.xlu0 %796
    %v798 = vsel %vm794, %v793, 0.0
    %799 = vadd.xlane.f32.xlu0 %v798
    %v800 = vpop.xlane.xlu0 %799
    %v801 = vadd.f32 %v797, 0.0
    %v802 = vadd.f32 %v800, 0.0
    %vm803 = vcmask 1040384
    %v804 = vsel %vm803, %v801, 0.0
    %v805 = vsel %vm803, %v802, 0.0
    %v806 = vadd.f32 %v804, %v805
    %v807 = vsub.f32 0.0, %v806
    %v808 = vld [vmem:[%s5] sm:$0xff]
    %v809 = vld [vmem:[%s5 + $0x8] sm:$0xff]
    %810 = vset.pattern.permute.xlu0 1
    %811 = vperm.xlu0 %810, %v156
    %v812 = vpop.permute.xlu0 %811
    %813 = vset.pattern.permute.xlu0 1
    %814 = vperm.xlu0 %813, %v157
    %v815 = vpop.permute.xlu0 %814
    %vm816 = vcmp.eq.s32.totalorder %v159, %v812
    %vm817 = vcmp.eq.s32.totalorder %v159, %v815
    %v818 = vsel %vm816, 1, 0
    %v819 = vsel %vm817, 1, 0
    %v820 = vcvt.s32.f32 %v818
    %v821 = vcvt.s32.f32 %v819
    %v822 = vsub.f32 1.0, %v808
    %v823 = vsub.f32 1.0, %v809
    %v824 = vlog2.pop %v822
    %v825 = vmul.f32 %v824, 0.6931472
    %v826 = vlog2.pop %v823
    %v827 = vmul.f32 %v826, 0.6931472
    %v828 = vmax.f32 %v825, -100.0
    %v829 = vmax.f32 %v827, -100.0
    %v830 = vmul.f32 %v808, %v820
    %v831 = vmul.f32 %v809, %v821
    %v833 = vsel %vm149, %v830, 0
    %835 = vmatprep.subr.mxu0 0.0
    %836 = vmatpush1.xpose.msra.mxu0 %v833
    %837 = vmatprep.subr.mxu0 0.0
    %838 = vmatpush1.xpose.msra.mxu0 0.0
    %839 = vmatprep.subr.mxu0 0.0
    %840 = vmatpush1.xpose.msra.mxu0 0.0
    %841 = vmatprep.subr.mxu0 0.0
    %842 = vmatpush1.xpose.msra.mxu0 0.0
    %843 = vmatprep.subr.mxu0 0.0
    %844 = vmatpush1.xpose.msra.mxu0 0.0
    %845 = vmatprep.subr.mxu0 0.0
    %846 = vmatpush1.xpose.msra.mxu0 0.0
    %847 = vmatprep.subr.mxu0 0.0
    %848 = vmatpush1.xpose.msra.mxu0 0.0
    %849 = vmatprep.subr.mxu0 0.0
    %850 = vmatpush1.xpose.msra.mxu0 0.0
    %851 = vmatprep.subr.mxu0 0.0
    %852 = vmatpush1.xpose.msra.mxu0 0.0
    %853 = vmatprep.subr.mxu0 0.0
    %854 = vmatpush1.xpose.msra.mxu0 0.0
    %855 = vmatprep.subr.mxu0 0.0
    %856 = vmatpush1.xpose.msra.mxu0 0.0
    %857 = vmatprep.subr.mxu0 0.0
    %858 = vmatpush1.xpose.msra.mxu0 0.0
    %859 = vmatprep.subr.mxu0 0.0
    %860 = vmatpush1.xpose.msra.mxu0 0.0
    %861 = vmatprep.subr.mxu0 0.0
    %862 = vmatpush1.xpose.msra.mxu0 0.0
    %863 = vmatprep.subr.mxu0 0.0
    %864 = vmatpush1.xpose.msra.mxu0 0.0
    %865 = vmatprep.subr.mxu0 0.0
    %866 = vmatpush1.xpose.msra.mxu0 0.0
    %867 = vmatprep.subr.mxu0 0.0
    %868 = vmatpush1.xpose.msra.mxu0 0.0
    %869 = vmatprep.subr.mxu0 0.0
    %870 = vmatpush1.xpose.msra.mxu0 0.0
    %871 = vmatprep.subr.mxu0 0.0
    %872 = vmatpush1.xpose.msra.mxu0 0.0
    %873 = vmatprep.subr.mxu0 0.0
    %874 = vmatpush1.xpose.msra.mxu0 0.0
    %875 = vmatprep.subr.mxu0 0.0
    %876 = vmatpush1.xpose.msra.mxu0 0.0
    %877 = vmatprep.subr.mxu0 0.0
    %878 = vmatpush1.xpose.msra.mxu0 0.0
    %879 = vmatprep.subr.mxu0 0.0
    %880 = vmatpush1.xpose.msra.mxu0 0.0
    %881 = vmatprep.subr.mxu0 0.0
    %882 = vmatpush1.xpose.msra.mxu0 0.0
    %883 = vmatprep.subr.mxu0 0.0
    %884 = vmatpush1.xpose.msra.mxu0 0.0
    %885 = vmatprep.subr.mxu0 0.0
    %886 = vmatpush1.xpose.msra.mxu0 0.0
    %887 = vmatprep.subr.mxu0 0.0
    %888 = vmatpush1.xpose.msra.mxu0 0.0
    %889 = vmatprep.subr.mxu0 0.0
    %890 = vmatpush1.xpose.msra.mxu0 0.0
    %891 = vmatprep.subr.mxu0 0.0
    %892 = vmatpush1.xpose.msra.mxu0 0.0
    %893 = vmatprep.subr.mxu0 0.0
    %894 = vmatpush1.xpose.msra.mxu0 0.0
    %895 = vmatprep.subr.mxu0 0.0
    %896 = vmatpush1.xpose.msra.mxu0 0.0
    %897 = vmatprep.subr.mxu0 0.0
    %898 = vmatpush1.xpose.msra.mxu0 0.0
    %899 = vmatprep.mubr.f32.mxu0 0.0
    %900 = vmatmul.mubr.f32.gmra.mrb[0].mxu0 %v188
    %v901 = vpop.f32.mrb[0].mxu0
    %v902 = vadd.f32 0.0, %v901
    %v903 = vpop.f32.mrb[0].mxu0
    %904 = vdwg.mxu0
    %v906 = vsel %vm149, %v831, 0
    %908 = vmatprep.subr.mxu0 0.0
    %909 = vmatpush1.xpose.msra.mxu0 %v906
    %910 = vmatprep.subr.mxu0 0.0
    %911 = vmatpush1.xpose.msra.mxu0 0.0
    %912 = vmatprep.subr.mxu0 0.0
    %913 = vmatpush1.xpose.msra.mxu0 0.0
    %914 = vmatprep.subr.mxu0 0.0
    %915 = vmatpush1.xpose.msra.mxu0 0.0
    %916 = vmatprep.subr.mxu0 0.0
    %917 = vmatpush1.xpose.msra.mxu0 0.0
    %918 = vmatprep.subr.mxu0 0.0
    %919 = vmatpush1.xpose.msra.mxu0 0.0
    %920 = vmatprep.subr.mxu0 0.0
    %921 = vmatpush1.xpose.msra.mxu0 0.0
    %922 = vmatprep.subr.mxu0 0.0
    %923 = vmatpush1.xpose.msra.mxu0 0.0
    %924 = vmatprep.subr.mxu0 0.0
    %925 = vmatpush1.xpose.msra.mxu0 0.0
    %926 = vmatprep.subr.mxu0 0.0
    %927 = vmatpush1.xpose.msra.mxu0 0.0
    %928 = vmatprep.subr.mxu0 0.0
    %929 = vmatpush1.xpose.msra.mxu0 0.0
    %930 = vmatprep.subr.mxu0 0.0
    %931 = vmatpush1.xpose.msra.mxu0 0.0
    %932 = vmatprep.subr.mxu0 0.0
    %933 = vmatpush1.xpose.msra.mxu0 0.0
    %934 = vmatprep.subr.mxu0 0.0
    %935 = vmatpush1.xpose.msra.mxu0 0.0
    %936 = vmatprep.subr.mxu0 0.0
    %937 = vmatpush1.xpose.msra.mxu0 0.0
    %938 = vmatprep.subr.mxu0 0.0
    %939 = vmatpush1.xpose.msra.mxu0 0.0
    %940 = vmatprep.subr.mxu0 0.0
    %941 = vmatpush1.xpose.msra.mxu0 0.0
    %942 = vmatprep.subr.mxu0 0.0
    %943 = vmatpush1.xpose.msra.mxu0 0.0
    %944 = vmatprep.subr.mxu0 0.0
    %945 = vmatpush1.xpose.msra.mxu0 0.0
    %946 = vmatprep.subr.mxu0 0.0
    %947 = vmatpush1.xpose.msra.mxu0 0.0
    %948 = vmatprep.subr.mxu0 0.0
    %949 = vmatpush1.xpose.msra.mxu0 0.0
    %950 = vmatprep.subr.mxu0 0.0
    %951 = vmatpush1.xpose.msra.mxu0 0.0
    %952 = vmatprep.subr.mxu0 0.0
    %953 = vmatpush1.xpose.msra.mxu0 0.0
    %954 = vmatprep.subr.mxu0 0.0
    %955 = vmatpush1.xpose.msra.mxu0 0.0
    %956 = vmatprep.subr.mxu0 0.0
    %957 = vmatpush1.xpose.msra.mxu0 0.0
    %958 = vmatprep.subr.mxu0 0.0
    %959 = vmatpush1.xpose.msra.mxu0 0.0
    %960 = vmatprep.subr.mxu0 0.0
    %961 = vmatpush1.xpose.msra.mxu0 0.0
    %962 = vmatprep.subr.mxu0 0.0
    %963 = vmatpush1.xpose.msra.mxu0 0.0
    %964 = vmatprep.subr.mxu0 0.0
    %965 = vmatpush1.xpose.msra.mxu0 0.0
    %966 = vmatprep.subr.mxu0 0.0
    %967 = vmatpush1.xpose.msra.mxu0 0.0
    %968 = vmatprep.subr.mxu0 0.0
    %969 = vmatpush1.xpose.msra.mxu0 0.0
    %970 = vmatprep.subr.mxu0 0.0
    %971 = vmatpush1.xpose.msra.mxu0 0.0
    %972 = vmatprep.mubr.f32.mxu0 0.0
    %973 = vmatmul.mubr.f32.gmra.mrb[0].mxu0 %v188
    %v974 = vpop.f32.mrb[0].mxu0
    %v975 = vadd.f32 0.0, %v974
    %v976 = vpop.f32.mrb[0].mxu0
    %977 = vdwg.mxu0
    %v978 = vmul.f32 %v828, %v820
    %v979 = vmul.f32 %v829, %v821
    %v981 = vsel %vm149, %v978, 0
    %983 = vmatprep.subr.mxu0 0.0
    %984 = vmatpush1.xpose.msra.mxu0 %v981
    %985 = vmatprep.subr.mxu0 0.0
    %986 = vmatpush1.xpose.msra.mxu0 0.0
    %987 = vmatprep.subr.mxu0 0.0
    %988 = vmatpush1.xpose.msra.mxu0 0.0
    %989 = vmatprep.subr.mxu0 0.0
    %990 = vmatpush1.xpose.msra.mxu0 0.0
    %991 = vmatprep.subr.mxu0 0.0
    %992 = vmatpush1.xpose.msra.mxu0 0.0
    %993 = vmatprep.subr.mxu0 0.0
    %994 = vmatpush1.xpose.msra.mxu0 0.0
    %995 = vmatprep.subr.mxu0 0.0
    %996 = vmatpush1.xpose.msra.mxu0 0.0
    %997 = vmatprep.subr.mxu0 0.0
    %998 = vmatpush1.xpose.msra.mxu0 0.0
    %999 = vmatprep.subr.mxu0 0.0
    %1000 = vmatpush1.xpose.msra.mxu0 0.0
    %1001 = vmatprep.subr.mxu0 0.0
    %1002 = vmatpush1.xpose.msra.mxu0 0.0
    %1003 = vmatprep.subr.mxu0 0.0
    %1004 = vmatpush1.xpose.msra.mxu0 0.0
    %1005 = vmatprep.subr.mxu0 0.0
    %1006 = vmatpush1.xpose.msra.mxu0 0.0
    %1007 = vmatprep.subr.mxu0 0.0
    %1008 = vmatpush1.xpose.msra.mxu0 0.0
    %1009 = vmatprep.subr.mxu0 0.0
    %1010 = vmatpush1.xpose.msra.mxu0 0.0
    %1011 = vmatprep.subr.mxu0 0.0
    %1012 = vmatpush1.xpose.msra.mxu0 0.0
    %1013 = vmatprep.subr.mxu0 0.0
    %1014 = vmatpush1.xpose.msra.mxu0 0.0
    %1015 = vmatprep.subr.mxu0 0.0
    %1016 = vmatpush1.xpose.msra.mxu0 0.0
    %1017 = vmatprep.subr.mxu0 0.0
    %1018 = vmatpush1.xpose.msra.mxu0 0.0
    %1019 = vmatprep.subr.mxu0 0.0
    %1020 = vmatpush1.xpose.msra.mxu0 0.0
    %1021 = vmatprep.subr.mxu0 0.0
    %1022 = vmatpush1.xpose.msra.mxu0 0.0
    %1023 = vmatprep.subr.mxu0 0.0
    %1024 = vmatpush1.xpose.msra.mxu0 0.0
    %1025 = vmatprep.subr.mxu0 0.0
    %1026 = vmatpush1.xpose.msra.mxu0 0.0
    %1027 = vmatprep.subr.mxu0 0.0
    %1028 = vmatpush1.xpose.msra.mxu0 0.0
    %1029 = vmatprep.subr.mxu0 0.0
    %1030 = vmatpush1.xpose.msra.mxu0 0.0
    %1031 = vmatprep.subr.mxu0 0.0
    %1032 = vmatpush1.xpose.msra.mxu0 0.0
    %1033 = vmatprep.subr.mxu0 0.0
    %1034 = vmatpush1.xpose.msra.mxu0 0.0
    %1035 = vmatprep.subr.mxu0 0.0
    %1036 = vmatpush1.xpose.msra.mxu0 0.0
    %1037 = vmatprep.subr.mxu0 0.0
    %1038 = vmatpush1.xpose.msra.mxu0 0.0
    %1039 = vmatprep.subr.mxu0 0.0
    %1040 = vmatpush1.xpose.msra.mxu0 0.0
    %1041 = vmatprep.subr.mxu0 0.0
    %1042 = vmatpush1.xpose.msra.mxu0 0.0
    %1043 = vmatprep.subr.mxu0 0.0
    %1044 = vmatpush1.xpose.msra.mxu0 0.0
    %1045 = vmatprep.subr.mxu0 0.0
    %1046 = vmatpush1.xpose.msra.mxu0 0.0
    %1047 = vmatprep.mubr.f32.mxu0 0.0
    %1048 = vmatmul.mubr.f32.gmra.mrb[0].mxu0 %v188
    %v1049 = vpop.f32.mrb[0].mxu0
    %v1050 = vadd.f32 0.0, %v1049
    %v1051 = vpop.f32.mrb[0].mxu0
    %1052 = vdwg.mxu0
    %v1054 = vsel %vm149, %v979, 0
    %1056 = vmatprep.subr.mxu0 0.0
    %1057 = vmatpush1.xpose.msra.mxu0 %v1054
    %1058 = vmatprep.subr.mxu0 0.0
    %1059 = vmatpush1.xpose.msra.mxu0 0.0
    %1060 = vmatprep.subr.mxu0 0.0
    %1061 = vmatpush1.xpose.msra.mxu0 0.0
    %1062 = vmatprep.subr.mxu0 0.0
    %1063 = vmatpush1.xpose.msra.mxu0 0.0
    %1064 = vmatprep.subr.mxu0 0.0
    %1065 = vmatpush1.xpose.msra.mxu0 0.0
    %1066 = vmatprep.subr.mxu0 0.0
    %1067 = vmatpush1.xpose.msra.mxu0 0.0
    %1068 = vmatprep.subr.mxu0 0.0
    %1069 = vmatpush1.xpose.msra.mxu0 0.0
    %1070 = vmatprep.subr.mxu0 0.0
    %1071 = vmatpush1.xpose.msra.mxu0 0.0
    %1072 = vmatprep.subr.mxu0 0.0
    %1073 = vmatpush1.xpose.msra.mxu0 0.0
    %1074 = vmatprep.subr.mxu0 0.0
    %1075 = vmatpush1.xpose.msra.mxu0 0.0
    %1076 = vmatprep.subr.mxu0 0.0
    %1077 = vmatpush1.xpose.msra.mxu0 0.0
    %1078 = vmatprep.subr.mxu0 0.0
    %1079 = vmatpush1.xpose.msra.mxu0 0.0
    %1080 = vmatprep.subr.mxu0 0.0
    %1081 = vmatpush1.xpose.msra.mxu0 0.0
    %1082 = vmatprep.subr.mxu0 0.0
    %1083 = vmatpush1.xpose.msra.mxu0 0.0
    %1084 = vmatprep.subr.mxu0 0.0
    %1085 = vmatpush1.xpose.msra.mxu0 0.0
    %1086 = vmatprep.subr.mxu0 0.0
    %1087 = vmatpush1.xpose.msra.mxu0 0.0
    %1088 = vmatprep.subr.mxu0 0.0
    %1089 = vmatpush1.xpose.msra.mxu0 0.0
    %1090 = vmatprep.subr.mxu0 0.0
    %1091 = vmatpush1.xpose.msra.mxu0 0.0
    %1092 = vmatprep.subr.mxu0 0.0
    %1093 = vmatpush1.xpose.msra.mxu0 0.0
    %1094 = vmatprep.subr.mxu0 0.0
    %1095 = vmatpush1.xpose.msra.mxu0 0.0
    %1096 = vmatprep.subr.mxu0 0.0
    %1097 = vmatpush1.xpose.msra.mxu0 0.0
    %1098 = vmatprep.subr.mxu0 0.0
    %1099 = vmatpush1.xpose.msra.mxu0 0.0
    %1100 = vmatprep.subr.mxu0 0.0
    %1101 = vmatpush1.xpose.msra.mxu0 0.0
    %1102 = vmatprep.subr.mxu0 0.0
    %1103 = vmatpush1.xpose.msra.mxu0 0.0
    %1104 = vmatprep.subr.mxu0 0.0
    %1105 = vmatpush1.xpose.msra.mxu0 0.0
    %1106 = vmatprep.subr.mxu0 0.0
    %1107 = vmatpush1.xpose.msra.mxu0 0.0
    %1108 = vmatprep.subr.mxu0 0.0
    %1109 = vmatpush1.xpose.msra.mxu0 0.0
    %1110 = vmatprep.subr.mxu0 0.0
    %1111 = vmatpush1.xpose.msra.mxu0 0.0
    %1112 = vmatprep.subr.mxu0 0.0
    %1113 = vmatpush1.xpose.msra.mxu0 0.0
    %1114 = vmatprep.subr.mxu0 0.0
    %1115 = vmatpush1.xpose.msra.mxu0 0.0
    %1116 = vmatprep.subr.mxu0 0.0
    %1117 = vmatpush1.xpose.msra.mxu0 0.0
    %1118 = vmatprep.subr.mxu0 0.0
    %1119 = vmatpush1.xpose.msra.mxu0 0.0
    %1120 = vmatprep.mubr.f32.mxu0 0.0
    %1121 = vmatmul.mubr.f32.gmra.mrb[0].mxu0 %v188
    %v1122 = vpop.f32.mrb[0].mxu0
    %v1123 = vadd.f32 0.0, %v1122
    %v1124 = vpop.f32.mrb[0].mxu0
    %1125 = vdwg.mxu0
    %v1127 = vsel %vm149, %v820, 0
    %1129 = vmatprep.subr.mxu0 0.0
    %1130 = vmatpush1.xpose.msra.mxu0 %v1127
    %1131 = vmatprep.subr.mxu0 0.0
    %1132 = vmatpush1.xpose.msra.mxu0 0.0
    %1133 = vmatprep.subr.mxu0 0.0
    %1134 = vmatpush1.xpose.msra.mxu0 0.0
    %1135 = vmatprep.subr.mxu0 0.0
    %1136 = vmatpush1.xpose.msra.mxu0 0.0
    %1137 = vmatprep.subr.mxu0 0.0
    %1138 = vmatpush1.xpose.msra.mxu0 0.0
    %1139 = vmatprep.subr.mxu0 0.0
    %1140 = vmatpush1.xpose.msra.mxu0 0.0
    %1141 = vmatprep.subr.mxu0 0.0
    %1142 = vmatpush1.xpose.msra.mxu0 0.0
    %1143 = vmatprep.subr.mxu0 0.0
    %1144 = vmatpush1.xpose.msra.mxu0 0.0
    %1145 = vmatprep.subr.mxu0 0.0
    %1146 = vmatpush1.xpose.msra.mxu0 0.0
    %1147 = vmatprep.subr.mxu0 0.0
    %1148 = vmatpush1.xpose.msra.mxu0 0.0
    %1149 = vmatprep.subr.mxu0 0.0
    %1150 = vmatpush1.xpose.msra.mxu0 0.0
    %1151 = vmatprep.subr.mxu0 0.0
    %1152 = vmatpush1.xpose.msra.mxu0 0.0
    %1153 = vmatprep.subr.mxu0 0.0
    %1154 = vmatpush1.xpose.msra.mxu0 0.0
    %1155 = vmatprep.subr.mxu0 0.0
    %1156 = vmatpush1.xpose.msra.mxu0 0.0
    %1157 = vmatprep.subr.mxu0 0.0
    %1158 = vmatpush1.xpose.msra.mxu0 0.0
    %1159 = vmatprep.subr.mxu0 0.0
    %1160 = vmatpush1.xpose.msra.mxu0 0.0
    %1161 = vmatprep.subr.mxu0 0.0
    %1162 = vmatpush1.xpose.msra.mxu0 0.0
    %1163 = vmatprep.subr.mxu0 0.0
    %1164 = vmatpush1.xpose.msra.mxu0 0.0
    %1165 = vmatprep.subr.mxu0 0.0
    %1166 = vmatpush1.xpose.msra.mxu0 0.0
    %1167 = vmatprep.subr.mxu0 0.0
    %1168 = vmatpush1.xpose.msra.mxu0 0.0
    %1169 = vmatprep.subr.mxu0 0.0
    %1170 = vmatpush1.xpose.msra.mxu0 0.0
    %1171 = vmatprep.subr.mxu0 0.0
    %1172 = vmatpush1.xpose.msra.mxu0 0.0
    %1173 = vmatprep.subr.mxu0 0.0
    %1174 = vmatpush1.xpose.msra.mxu0 0.0
    %1175 = vmatprep.subr.mxu0 0.0
    %1176 = vmatpush1.xpose.msra.mxu0 0.0
    %1177 = vmatprep.subr.mxu0 0.0
    %1178 = vmatpush1.xpose.msra.mxu0 0.0
    %1179 = vmatprep.subr.mxu0 0.0
    %1180 = vmatpush1.xpose.msra.mxu0 0.0
    %1181 = vmatprep.subr.mxu0 0.0
    %1182 = vmatpush1.xpose.msra.mxu0 0.0
    %1183 = vmatprep.subr.mxu0 0.0
    %1184 = vmatpush1.xpose.msra.mxu0 0.0
    %1185 = vmatprep.subr.mxu0 0.0
    %1186 = vmatpush1.xpose.msra.mxu0 0.0
    %1187 = vmatprep.subr.mxu0 0.0
    %1188 = vmatpush1.xpose.msra.mxu0 0.0
    %1189 = vmatprep.subr.mxu0 0.0
    %1190 = vmatpush1.xpose.msra.mxu0 0.0
    %1191 = vmatprep.subr.mxu0 0.0
    %1192 = vmatpush1.xpose.msra.mxu0 0.0
    %1193 = vmatprep.mubr.f32.mxu0 0.0
    %1194 = vmatmul.mubr.f32.gmra.mrb[0].mxu0 %v485
    %v1195 = vpop.f32.mrb[0].mxu0
    %v1196 = vadd.f32 0.0, %v1195
    %v1197 = vpop.f32.mrb[0].mxu0
    %1198 = vdwg.mxu0
    %v1200 = vsel %vm149, %v821, 0
    %1202 = vmatprep.subr.mxu0 0.0
    %1203 = vmatpush1.xpose.msra.mxu0 %v1200
    %1204 = vmatprep.subr.mxu0 0.0
    %1205 = vmatpush1.xpose.msra.mxu0 0.0
    %1206 = vmatprep.subr.mxu0 0.0
    %1207 = vmatpush1.xpose.msra.mxu0 0.0
    %1208 = vmatprep.subr.mxu0 0.0
    %1209 = vmatpush1.xpose.msra.mxu0 0.0
    %1210 = vmatprep.subr.mxu0 0.0
    %1211 = vmatpush1.xpose.msra.mxu0 0.0
    %1212 = vmatprep.subr.mxu0 0.0
    %1213 = vmatpush1.xpose.msra.mxu0 0.0
    %1214 = vmatprep.subr.mxu0 0.0
    %1215 = vmatpush1.xpose.msra.mxu0 0.0
    %1216 = vmatprep.subr.mxu0 0.0
    %1217 = vmatpush1.xpose.msra.mxu0 0.0
    %1218 = vmatprep.subr.mxu0 0.0
    %1219 = vmatpush1.xpose.msra.mxu0 0.0
    %1220 = vmatprep.subr.mxu0 0.0
    %1221 = vmatpush1.xpose.msra.mxu0 0.0
    %1222 = vmatprep.subr.mxu0 0.0
    %1223 = vmatpush1.xpose.msra.mxu0 0.0
    %1224 = vmatprep.subr.mxu0 0.0
    %1225 = vmatpush1.xpose.msra.mxu0 0.0
    %1226 = vmatprep.subr.mxu0 0.0
    %1227 = vmatpush1.xpose.msra.mxu0 0.0
    %1228 = vmatprep.subr.mxu0 0.0
    %1229 = vmatpush1.xpose.msra.mxu0 0.0
    %1230 = vmatprep.subr.mxu0 0.0
    %1231 = vmatpush1.xpose.msra.mxu0 0.0
    %1232 = vmatprep.subr.mxu0 0.0
    %1233 = vmatpush1.xpose.msra.mxu0 0.0
    %1234 = vmatprep.subr.mxu0 0.0
    %1235 = vmatpush1.xpose.msra.mxu0 0.0
    %1236 = vmatprep.subr.mxu0 0.0
    %1237 = vmatpush1.xpose.msra.mxu0 0.0
    %1238 = vmatprep.subr.mxu0 0.0
    %1239 = vmatpush1.xpose.msra.mxu0 0.0
    %1240 = vmatprep.subr.mxu0 0.0
    %1241 = vmatpush1.xpose.msra.mxu0 0.0
    %1242 = vmatprep.subr.mxu0 0.0
    %1243 = vmatpush1.xpose.msra.mxu0 0.0
    %1244 = vmatprep.subr.mxu0 0.0
    %1245 = vmatpush1.xpose.msra.mxu0 0.0
    %1246 = vmatprep.subr.mxu0 0.0
    %1247 = vmatpush1.xpose.msra.mxu0 0.0
    %1248 = vmatprep.subr.mxu0 0.0
    %1249 = vmatpush1.xpose.msra.mxu0 0.0
    %1250 = vmatprep.subr.mxu0 0.0
    %1251 = vmatpush1.xpose.msra.mxu0 0.0
    %1252 = vmatprep.subr.mxu0 0.0
    %1253 = vmatpush1.xpose.msra.mxu0 0.0
    %1254 = vmatprep.subr.mxu0 0.0
    %1255 = vmatpush1.xpose.msra.mxu0 0.0
    %1256 = vmatprep.subr.mxu0 0.0
    %1257 = vmatpush1.xpose.msra.mxu0 0.0
    %1258 = vmatprep.subr.mxu0 0.0
    %1259 = vmatpush1.xpose.msra.mxu0 0.0
    %1260 = vmatprep.subr.mxu0 0.0
    %1261 = vmatpush1.xpose.msra.mxu0 0.0
    %1262 = vmatprep.subr.mxu0 0.0
    %1263 = vmatpush1.xpose.msra.mxu0 0.0
    %1264 = vmatprep.subr.mxu0 0.0
    %1265 = vmatpush1.xpose.msra.mxu0 0.0
    %1266 = vmatprep.mubr.f32.mxu0 0.0
    %1267 = vmatmul.mubr.f32.gmra.mrb[0].mxu0 %v561
    %v1268 = vpop.f32.mrb[0].mxu0
    %v1269 = vadd.f32 0.0, %v1268
    %v1270 = vpop.f32.mrb[0].mxu0
    %1271 = vdwg.mxu0
    %v1272 = vlog2.pop %v902
    %v1273 = vmul.f32 %v1272, 0.6931472
    %v1274 = vlog2.pop %v975
    %v1275 = vmul.f32 %v1274, 0.6931472
    %v1276 = vmax.f32 %v1273, -100.0
    %v1277 = vmax.f32 %v1275, -100.0
    %v1278 = vsub.f32 %v1276, %v1050
    %v1279 = vsub.f32 %v1277, %v1123
    %v1280 = vmul.f32 %v1278, %v1196
    %v1281 = vmul.f32 %v1279, %v1269
    %v1283 = vsel %vm149, %v828, 0
    %1285 = vmatprep.subr.mxu0 0.0
    %1286 = vmatpush1.xpose.msra.mxu0 %v1283
    %1287 = vmatprep.subr.mxu0 0.0
    %1288 = vmatpush1.xpose.msra.mxu0 0.0
    %1289 = vmatprep.subr.mxu0 0.0
    %1290 = vmatpush1.xpose.msra.mxu0 0.0
    %1291 = vmatprep.subr.mxu0 0.0
    %1292 = vmatpush1.xpose.msra.mxu0 0.0
    %1293 = vmatprep.subr.mxu0 0.0
    %1294 = vmatpush1.xpose.msra.mxu0 0.0
    %1295 = vmatprep.subr.mxu0 0.0
    %1296 = vmatpush1.xpose.msra.mxu0 0.0
    %1297 = vmatprep.subr.mxu0 0.0
    %1298 = vmatpush1.xpose.msra.mxu0 0.0
    %1299 = vmatprep.subr.mxu0 0.0
    %1300 = vmatpush1.xpose.msra.mxu0 0.0
    %1301 = vmatprep.subr.mxu0 0.0
    %1302 = vmatpush1.xpose.msra.mxu0 0.0
    %1303 = vmatprep.subr.mxu0 0.0
    %1304 = vmatpush1.xpose.msra.mxu0 0.0
    %1305 = vmatprep.subr.mxu0 0.0
    %1306 = vmatpush1.xpose.msra.mxu0 0.0
    %1307 = vmatprep.subr.mxu0 0.0
    %1308 = vmatpush1.xpose.msra.mxu0 0.0
    %1309 = vmatprep.subr.mxu0 0.0
    %1310 = vmatpush1.xpose.msra.mxu0 0.0
    %1311 = vmatprep.subr.mxu0 0.0
    %1312 = vmatpush1.xpose.msra.mxu0 0.0
    %1313 = vmatprep.subr.mxu0 0.0
    %1314 = vmatpush1.xpose.msra.mxu0 0.0
    %1315 = vmatprep.subr.mxu0 0.0
    %1316 = vmatpush1.xpose.msra.mxu0 0.0
    %1317 = vmatprep.subr.mxu0 0.0
    %1318 = vmatpush1.xpose.msra.mxu0 0.0
    %1319 = vmatprep.subr.mxu0 0.0
    %1320 = vmatpush1.xpose.msra.mxu0 0.0
    %1321 = vmatprep.subr.mxu0 0.0
    %1322 = vmatpush1.xpose.msra.mxu0 0.0
    %1323 = vmatprep.subr.mxu0 0.0
    %1324 = vmatpush1.xpose.msra.mxu0 0.0
    %1325 = vmatprep.subr.mxu0 0.0
    %1326 = vmatpush1.xpose.msra.mxu0 0.0
    %1327 = vmatprep.subr.mxu0 0.0
    %1328 = vmatpush1.xpose.msra.mxu0 0.0
    %1329 = vmatprep.subr.mxu0 0.0
    %1330 = vmatpush1.xpose.msra.mxu0 0.0
    %1331 = vmatprep.subr.mxu0 0.0
    %1332 = vmatpush1.xpose.msra.mxu0 0.0
    %1333 = vmatprep.subr.mxu0 0.0
    %1334 = vmatpush1.xpose.msra.mxu0 0.0
    %1335 = vmatprep.subr.mxu0 0.0
    %1336 = vmatpush1.xpose.msra.mxu0 0.0
    %1337 = vmatprep.subr.mxu0 0.0
    %1338 = vmatpush1.xpose.msra.mxu0 0.0
    %1339 = vmatprep.subr.mxu0 0.0
    %1340 = vmatpush1.xpose.msra.mxu0 0.0
    %1341 = vmatprep.subr.mxu0 0.0
    %1342 = vmatpush1.xpose.msra.mxu0 0.0
    %1343 = vmatprep.subr.mxu0 0.0
    %1344 = vmatpush1.xpose.msra.mxu0 0.0
    %1345 = vmatprep.subr.mxu0 0.0
    %1346 = vmatpush1.xpose.msra.mxu0 0.0
    %1347 = vmatprep.subr.mxu0 0.0
    %1348 = vmatpush1.xpose.msra.mxu0 0.0
    %1349 = vmatprep.mubr.f32.mxu0 0.0
    %1350 = vmatmul.mubr.f32.gmra.mrb[0].mxu0 %v485
    %v1351 = vpop.f32.mrb[0].mxu0
    %v1352 = vadd.f32 %v1280, %v1351
    %v1353 = vpop.f32.mrb[0].mxu0
    %1354 = vdwg.mxu0
    %v1356 = vsel %vm149, %v829, 0
    %1358 = vmatprep.subr.mxu0 0.0
    %1359 = vmatpush1.xpose.msra.mxu0 %v1356
    %1360 = vmatprep.subr.mxu0 0.0
    %1361 = vmatpush1.xpose.msra.mxu0 0.0
    %1362 = vmatprep.subr.mxu0 0.0
    %1363 = vmatpush1.xpose.msra.mxu0 0.0
    %1364 = vmatprep.subr.mxu0 0.0
    %1365 = vmatpush1.xpose.msra.mxu0 0.0
    %1366 = vmatprep.subr.mxu0 0.0
    %1367 = vmatpush1.xpose.msra.mxu0 0.0
    %1368 = vmatprep.subr.mxu0 0.0
    %1369 = vmatpush1.xpose.msra.mxu0 0.0
    %1370 = vmatprep.subr.mxu0 0.0
    %1371 = vmatpush1.xpose.msra.mxu0 0.0
    %1372 = vmatprep.subr.mxu0 0.0
    %1373 = vmatpush1.xpose.msra.mxu0 0.0
    %1374 = vmatprep.subr.mxu0 0.0
    %1375 = vmatpush1.xpose.msra.mxu0 0.0
    %1376 = vmatprep.subr.mxu0 0.0
    %1377 = vmatpush1.xpose.msra.mxu0 0.0
    %1378 = vmatprep.subr.mxu0 0.0
    %1379 = vmatpush1.xpose.msra.mxu0 0.0
    %1380 = vmatprep.subr.mxu0 0.0
    %1381 = vmatpush1.xpose.msra.mxu0 0.0
    %1382 = vmatprep.subr.mxu0 0.0
    %1383 = vmatpush1.xpose.msra.mxu0 0.0
    %1384 = vmatprep.subr.mxu0 0.0
    %1385 = vmatpush1.xpose.msra.mxu0 0.0
    %1386 = vmatprep.subr.mxu0 0.0
    %1387 = vmatpush1.xpose.msra.mxu0 0.0
    %1388 = vmatprep.subr.mxu0 0.0
    %1389 = vmatpush1.xpose.msra.mxu0 0.0
    %1390 = vmatprep.subr.mxu0 0.0
    %1391 = vmatpush1.xpose.msra.mxu0 0.0
    %1392 = vmatprep.subr.mxu0 0.0
    %1393 = vmatpush1.xpose.msra.mxu0 0.0
    %1394 = vmatprep.subr.mxu0 0.0
    %1395 = vmatpush1.xpose.msra.mxu0 0.0
    %1396 = vmatprep.subr.mxu0 0.0
    %1397 = vmatpush1.xpose.msra.mxu0 0.0
    %1398 = vmatprep.subr.mxu0 0.0
    %1399 = vmatpush1.xpose.msra.mxu0 0.0
    %1400 = vmatprep.subr.mxu0 0.0
    %1401 = vmatpush1.xpose.msra.mxu0 0.0
    %1402 = vmatprep.subr.mxu0 0.0
    %1403 = vmatpush1.xpose.msra.mxu0 0.0
    %1404 = vmatprep.subr.mxu0 0.0
    %1405 = vmatpush1.xpose.msra.mxu0 0.0
    %1406 = vmatprep.subr.mxu0 0.0
    %1407 = vmatpush1.xpose.msra.mxu0 0.0
    %1408 = vmatprep.subr.mxu0 0.0
    %1409 = vmatpush1.xpose.msra.mxu0 0.0
    %1410 = vmatprep.subr.mxu0 0.0
    %1411 = vmatpush1.xpose.msra.mxu0 0.0
    %1412 = vmatprep.subr.mxu0 0.0
    %1413 = vmatpush1.xpose.msra.mxu0 0.0
    %1414 = vmatprep.subr.mxu0 0.0
    %1415 = vmatpush1.xpose.msra.mxu0 0.0
    %1416 = vmatprep.subr.mxu0 0.0
    %1417 = vmatpush1.xpose.msra.mxu0 0.0
    %1418 = vmatprep.subr.mxu0 0.0
    %1419 = vmatpush1.xpose.msra.mxu0 0.0
    %1420 = vmatprep.subr.mxu0 0.0
    %1421 = vmatpush1.xpose.msra.mxu0 0.0
    %1422 = vmatprep.mubr.f32.mxu0 0.0
    %1423 = vmatmul.mubr.f32.gmra.mrb[0].mxu0 %v561
    %v1424 = vpop.f32.mrb[0].mxu0
    %v1425 = vadd.f32 %v1281, %v1424
    %v1426 = vpop.f32.mrb[0].mxu0
    %1427 = vdwg.mxu0
    %v1428 = vmul.f32 %v1352, %v162
    %v1429 = vmul.f32 %v1425, %v162
    %v1430 = vsel %vm794, %v1428, 0.0
    %1431 = vadd.xlane.f32.xlu0 %v1430
    %v1432 = vpop.xlane.xlu0 %1431
    %v1433 = vsel %vm794, %v1429, 0.0
    %1434 = vadd.xlane.f32.xlu0 %v1433
    %v1435 = vpop.xlane.xlu0 %1434
    %v1436 = vadd.f32 %v1432, 0.0
    %v1437 = vadd.f32 %v1435, 0.0
    %v1438 = vsel %vm803, %v1436, 0.0
    %v1439 = vsel %vm803, %v1437, 0.0
    %v1440 = vadd.f32 %v1438, %v1439
    %v1441 = vsub.f32 0.0, %v1440
    %v1442 = vadd.f32 %v807, %v1441
    %v1443 = vld [vmem:[%s8] sm:$0xff]
    %v1444 = vld [vmem:[%s8 + $0x8] sm:$0xff]
    %v1445 = vld [vmem:[#allocation10] sm:$0xff]
    %v1446 = vld [vmem:[#allocation10 + $0x8] sm:$0xff]
    %v1448 = vsel %vm149, %v1443, 0
    %1450 = vmatprep.subr.mxu0 0.0
    %1451 = vmatpush1.xpose.msra.mxu0 %v1448
    %1452 = vmatprep.subr.mxu0 0.0
    %1453 = vmatpush1.xpose.msra.mxu0 0.0
    %1454 = vmatprep.subr.mxu0 0.0
    %1455 = vmatpush1.xpose.msra.mxu0 0.0
    %1456 = vmatprep.subr.mxu0 0.0
    %1457 = vmatpush1.xpose.msra.mxu0 0.0
    %1458 = vmatprep.subr.mxu0 0.0
    %1459 = vmatpush1.xpose.msra.mxu0 0.0
    %1460 = vmatprep.subr.mxu0 0.0
    %1461 = vmatpush1.xpose.msra.mxu0 0.0
    %1462 = vmatprep.subr.mxu0 0.0
    %1463 = vmatpush1.xpose.msra.mxu0 0.0
    %1464 = vmatprep.subr.mxu0 0.0
    %1465 = vmatpush1.xpose.msra.mxu0 0.0
    %1466 = vmatprep.subr.mxu0 0.0
    %1467 = vmatpush1.xpose.msra.mxu0 0.0
    %1468 = vmatprep.subr.mxu0 0.0
    %1469 = vmatpush1.xpose.msra.mxu0 0.0
    %1470 = vmatprep.subr.mxu0 0.0
    %1471 = vmatpush1.xpose.msra.mxu0 0.0
    %1472 = vmatprep.subr.mxu0 0.0
    %1473 = vmatpush1.xpose.msra.mxu0 0.0
    %1474 = vmatprep.subr.mxu0 0.0
    %1475 = vmatpush1.xpose.msra.mxu0 0.0
    %1476 = vmatprep.subr.mxu0 0.0
    %1477 = vmatpush1.xpose.msra.mxu0 0.0
    %1478 = vmatprep.subr.mxu0 0.0
    %1479 = vmatpush1.xpose.msra.mxu0 0.0
    %1480 = vmatprep.subr.mxu0 0.0
    %1481 = vmatpush1.xpose.msra.mxu0 0.0
    %1482 = vmatprep.subr.mxu0 0.0
    %1483 = vmatpush1.xpose.msra.mxu0 0.0
    %1484 = vmatprep.subr.mxu0 0.0
    %1485 = vmatpush1.xpose.msra.mxu0 0.0
    %1486 = vmatprep.subr.mxu0 0.0
    %1487 = vmatpush1.xpose.msra.mxu0 0.0
    %1488 = vmatprep.subr.mxu0 0.0
    %1489 = vmatpush1.xpose.msra.mxu0 0.0
    %1490 = vmatprep.subr.mxu0 0.0
    %1491 = vmatpush1.xpose.msra.mxu0 0.0
    %1492 = vmatprep.subr.mxu0 0.0
    %1493 = vmatpush1.xpose.msra.mxu0 0.0
    %1494 = vmatprep.subr.mxu0 0.0
    %1495 = vmatpush1.xpose.msra.mxu0 0.0
    %1496 = vmatprep.subr.mxu0 0.0
    %1497 = vmatpush1.xpose.msra.mxu0 0.0
    %1498 = vmatprep.subr.mxu0 0.0
    %1499 = vmatpush1.xpose.msra.mxu0 0.0
    %1500 = vmatprep.subr.mxu0 0.0
    %1501 = vmatpush1.xpose.msra.mxu0 0.0
    %1502 = vmatprep.subr.mxu0 0.0
    %1503 = vmatpush1.xpose.msra.mxu0 0.0
    %1504 = vmatprep.subr.mxu0 0.0
    %1505 = vmatpush1.xpose.msra.mxu0 0.0
    %1506 = vmatprep.subr.mxu0 0.0
    %1507 = vmatpush1.xpose.msra.mxu0 0.0
    %1508 = vmatprep.subr.mxu0 0.0
    %1509 = vmatpush1.xpose.msra.mxu0 0.0
    %1510 = vmatprep.subr.mxu0 0.0
    %1511 = vmatpush1.xpose.msra.mxu0 0.0
    %1512 = vmatprep.subr.mxu0 0.0
    %1513 = vmatpush1.xpose.msra.mxu0 0.0
    %1514 = vmatprep.mubr.f32.mxu0 0.0
    %1515 = vmatmul.mubr.f32.gmra.mrb[0].mxu0 %v188
    %v1516 = vpop.f32.mrb[0].mxu0
    %v1517 = vadd.f32 0.0, %v1516
    %v1518 = vpop.f32.mrb[0].mxu0
    %1519 = vdwg.mxu0
    %v1521 = vsel %vm149, %v1444, 0
    %1523 = vmatprep.subr.mxu0 0.0
    %1524 = vmatpush1.xpose.msra.mxu0 %v1521
    %1525 = vmatprep.subr.mxu0 0.0
    %1526 = vmatpush1.xpose.msra.mxu0 0.0
    %1527 = vmatprep.subr.mxu0 0.0
    %1528 = vmatpush1.xpose.msra.mxu0 0.0
    %1529 = vmatprep.subr.mxu0 0.0
    %1530 = vmatpush1.xpose.msra.mxu0 0.0
    %1531 = vmatprep.subr.mxu0 0.0
    %1532 = vmatpush1.xpose.msra.mxu0 0.0
    %1533 = vmatprep.subr.mxu0 0.0
    %1534 = vmatpush1.xpose.msra.mxu0 0.0
    %1535 = vmatprep.subr.mxu0 0.0
    %1536 = vmatpush1.xpose.msra.mxu0 0.0
    %1537 = vmatprep.subr.mxu0 0.0
    %1538 = vmatpush1.xpose.msra.mxu0 0.0
    %1539 = vmatprep.subr.mxu0 0.0
    %1540 = vmatpush1.xpose.msra.mxu0 0.0
    %1541 = vmatprep.subr.mxu0 0.0
    %1542 = vmatpush1.xpose.msra.mxu0 0.0
    %1543 = vmatprep.subr.mxu0 0.0
    %1544 = vmatpush1.xpose.msra.mxu0 0.0
    %1545 = vmatprep.subr.mxu0 0.0
    %1546 = vmatpush1.xpose.msra.mxu0 0.0
    %1547 = vmatprep.subr.mxu0 0.0
    %1548 = vmatpush1.xpose.msra.mxu0 0.0
    %1549 = vmatprep.subr.mxu0 0.0
    %1550 = vmatpush1.xpose.msra.mxu0 0.0
    %1551 = vmatprep.subr.mxu0 0.0
    %1552 = vmatpush1.xpose.msra.mxu0 0.0
    %1553 = vmatprep.subr.mxu0 0.0
    %1554 = vmatpush1.xpose.msra.mxu0 0.0
    %1555 = vmatprep.subr.mxu0 0.0
    %1556 = vmatpush1.xpose.msra.mxu0 0.0
    %1557 = vmatprep.subr.mxu0 0.0
    %1558 = vmatpush1.xpose.msra.mxu0 0.0
    %1559 = vmatprep.subr.mxu0 0.0
    %1560 = vmatpush1.xpose.msra.mxu0 0.0
    %1561 = vmatprep.subr.mxu0 0.0
    %1562 = vmatpush1.xpose.msra.mxu0 0.0
    %1563 = vmatprep.subr.mxu0 0.0
    %1564 = vmatpush1.xpose.msra.mxu0 0.0
    %1565 = vmatprep.subr.mxu0 0.0
    %1566 = vmatpush1.xpose.msra.mxu0 0.0
    %1567 = vmatprep.subr.mxu0 0.0
    %1568 = vmatpush1.xpose.msra.mxu0 0.0
    %1569 = vmatprep.subr.mxu0 0.0
    %1570 = vmatpush1.xpose.msra.mxu0 0.0
    %1571 = vmatprep.subr.mxu0 0.0
    %1572 = vmatpush1.xpose.msra.mxu0 0.0
    %1573 = vmatprep.subr.mxu0 0.0
    %1574 = vmatpush1.xpose.msra.mxu0 0.0
    %1575 = vmatprep.subr.mxu0 0.0
    %1576 = vmatpush1.xpose.msra.mxu0 0.0
    %1577 = vmatprep.subr.mxu0 0.0
    %1578 = vmatpush1.xpose.msra.mxu0 0.0
    %1579 = vmatprep.subr.mxu0 0.0
    %1580 = vmatpush1.xpose.msra.mxu0 0.0
    %1581 = vmatprep.subr.mxu0 0.0
    %1582 = vmatpush1.xpose.msra.mxu0 0.0
    %1583 = vmatprep.subr.mxu0 0.0
    %1584 = vmatpush1.xpose.msra.mxu0 0.0
    %1585 = vmatprep.subr.mxu0 0.0
    %1586 = vmatpush1.xpose.msra.mxu0 0.0
    %1587 = vmatprep.mubr.f32.mxu0 0.0
    %1588 = vmatmul.mubr.f32.gmra.mrb[0].mxu0 %v188
    %v1589 = vpop.f32.mrb[0].mxu0
    %v1590 = vadd.f32 0.0, %v1589
    %v1591 = vpop.f32.mrb[0].mxu0
    %1592 = vdwg.mxu0
    %v1593 = vmul.f32 %v1517, 0.0625
    %v1594 = vmul.f32 %v1590, 0.0625
    %v1596 = vsel %vm149, %v1445, 0
    %1598 = vmatprep.subr.mxu0 0.0
    %1599 = vmatpush1.xpose.msra.mxu0 %v1596
    %1600 = vmatprep.subr.mxu0 0.0
    %1601 = vmatpush1.xpose.msra.mxu0 0.0
    %1602 = vmatprep.subr.mxu0 0.0
    %1603 = vmatpush1.xpose.msra.mxu0 0.0
    %1604 = vmatprep.subr.mxu0 0.0
    %1605 = vmatpush1.xpose.msra.mxu0 0.0
    %1606 = vmatprep.subr.mxu0 0.0
    %1607 = vmatpush1.xpose.msra.mxu0 0.0
    %1608 = vmatprep.subr.mxu0 0.0
    %1609 = vmatpush1.xpose.msra.mxu0 0.0
    %1610 = vmatprep.subr.mxu0 0.0
    %1611 = vmatpush1.xpose.msra.mxu0 0.0
    %1612 = vmatprep.subr.mxu0 0.0
    %1613 = vmatpush1.xpose.msra.mxu0 0.0
    %1614 = vmatprep.subr.mxu0 0.0
    %1615 = vmatpush1.xpose.msra.mxu0 0.0
    %1616 = vmatprep.subr.mxu0 0.0
    %1617 = vmatpush1.xpose.msra.mxu0 0.0
    %1618 = vmatprep.subr.mxu0 0.0
    %1619 = vmatpush1.xpose.msra.mxu0 0.0
    %1620 = vmatprep.subr.mxu0 0.0
    %1621 = vmatpush1.xpose.msra.mxu0 0.0
    %1622 = vmatprep.subr.mxu0 0.0
    %1623 = vmatpush1.xpose.msra.mxu0 0.0
    %1624 = vmatprep.subr.mxu0 0.0
    %1625 = vmatpush1.xpose.msra.mxu0 0.0
    %1626 = vmatprep.subr.mxu0 0.0
    %1627 = vmatpush1.xpose.msra.mxu0 0.0
    %1628 = vmatprep.subr.mxu0 0.0
    %1629 = vmatpush1.xpose.msra.mxu0 0.0
    %1630 = vmatprep.subr.mxu0 0.0
    %1631 = vmatpush1.xpose.msra.mxu0 0.0
    %1632 = vmatprep.subr.mxu0 0.0
    %1633 = vmatpush1.xpose.msra.mxu0 0.0
    %1634 = vmatprep.subr.mxu0 0.0
    %1635 = vmatpush1.xpose.msra.mxu0 0.0
    %1636 = vmatprep.subr.mxu0 0.0
    %1637 = vmatpush1.xpose.msra.mxu0 0.0
    %1638 = vmatprep.subr.mxu0 0.0
    %1639 = vmatpush1.xpose.msra.mxu0 0.0
    %1640 = vmatprep.subr.mxu0 0.0
    %1641 = vmatpush1.xpose.msra.mxu0 0.0
    %1642 = vmatprep.subr.mxu0 0.0
    %1643 = vmatpush1.xpose.msra.mxu0 0.0
    %1644 = vmatprep.subr.mxu0 0.0
    %1645 = vmatpush1.xpose.msra.mxu0 0.0
    %1646 = vmatprep.subr.mxu0 0.0
    %1647 = vmatpush1.xpose.msra.mxu0 0.0
    %1648 = vmatprep.subr.mxu0 0.0
    %1649 = vmatpush1.xpose.msra.mxu0 0.0
    %1650 = vmatprep.subr.mxu0 0.0
    %1651 = vmatpush1.xpose.msra.mxu0 0.0
    %1652 = vmatprep.subr.mxu0 0.0
    %1653 = vmatpush1.xpose.msra.mxu0 0.0
    %1654 = vmatprep.subr.mxu0 0.0
    %1655 = vmatpush1.xpose.msra.mxu0 0.0
    %1656 = vmatprep.subr.mxu0 0.0
    %1657 = vmatpush1.xpose.msra.mxu0 0.0
    %1658 = vmatprep.subr.mxu0 0.0
    %1659 = vmatpush1.xpose.msra.mxu0 0.0
    %1660 = vmatprep.subr.mxu0 0.0
    %1661 = vmatpush1.xpose.msra.mxu0 0.0
    %1662 = vmatprep.mubr.f32.mxu0 0.0
    %1663 = vmatmul.mubr.f32.gmra.mrb[0].mxu0 %v188
    %v1664 = vpop.f32.mrb[0].mxu0
    %v1665 = vadd.f32 0.0, %v1664
    %v1666 = vpop.f32.mrb[0].mxu0
    %1667 = vdwg.mxu0
    %v1669 = vsel %vm149, %v1446, 0
    %1671 = vmatprep.subr.mxu0 0.0
    %1672 = vmatpush1.xpose.msra.mxu0 %v1669
    %1673 = vmatprep.subr.mxu0 0.0
    %1674 = vmatpush1.xpose.msra.mxu0 0.0
    %1675 = vmatprep.subr.mxu0 0.0
    %1676 = vmatpush1.xpose.msra.mxu0 0.0
    %1677 = vmatprep.subr.mxu0 0.0
    %1678 = vmatpush1.xpose.msra.mxu0 0.0
    %1679 = vmatprep.subr.mxu0 0.0
    %1680 = vmatpush1.xpose.msra.mxu0 0.0
    %1681 = vmatprep.subr.mxu0 0.0
    %1682 = vmatpush1.xpose.msra.mxu0 0.0
    %1683 = vmatprep.subr.mxu0 0.0
    %1684 = vmatpush1.xpose.msra.mxu0 0.0
    %1685 = vmatprep.subr.mxu0 0.0
    %1686 = vmatpush1.xpose.msra.mxu0 0.0
    %1687 = vmatprep.subr.mxu0 0.0
    %1688 = vmatpush1.xpose.msra.mxu0 0.0
    %1689 = vmatprep.subr.mxu0 0.0
    %1690 = vmatpush1.xpose.msra.mxu0 0.0
    %1691 = vmatprep.subr.mxu0 0.0
    %1692 = vmatpush1.xpose.msra.mxu0 0.0
    %1693 = vmatprep.subr.mxu0 0.0
    %1694 = vmatpush1.xpose.msra.mxu0 0.0
    %1695 = vmatprep.subr.mxu0 0.0
    %1696 = vmatpush1.xpose.msra.mxu0 0.0
    %1697 = vmatprep.subr.mxu0 0.0
    %1698 = vmatpush1.xpose.msra.mxu0 0.0
    %1699 = vmatprep.subr.mxu0 0.0
    %1700 = vmatpush1.xpose.msra.mxu0 0.0
    %1701 = vmatprep.subr.mxu0 0.0
    %1702 = vmatpush1.xpose.msra.mxu0 0.0
    %1703 = vmatprep.subr.mxu0 0.0
    %1704 = vmatpush1.xpose.msra.mxu0 0.0
    %1705 = vmatprep.subr.mxu0 0.0
    %1706 = vmatpush1.xpose.msra.mxu0 0.0
    %1707 = vmatprep.subr.mxu0 0.0
    %1708 = vmatpush1.xpose.msra.mxu0 0.0
    %1709 = vmatprep.subr.mxu0 0.0
    %1710 = vmatpush1.xpose.msra.mxu0 0.0
    %1711 = vmatprep.subr.mxu0 0.0
    %1712 = vmatpush1.xpose.msra.mxu0 0.0
    %1713 = vmatprep.subr.mxu0 0.0
    %1714 = vmatpush1.xpose.msra.mxu0 0.0
    %1715 = vmatprep.subr.mxu0 0.0
    %1716 = vmatpush1.xpose.msra.mxu0 0.0
    %1717 = vmatprep.subr.mxu0 0.0
    %1718 = vmatpush1.xpose.msra.mxu0 0.0
    %1719 = vmatprep.subr.mxu0 0.0
    %1720 = vmatpush1.xpose.msra.mxu0 0.0
    %1721 = vmatprep.subr.mxu0 0.0
    %1722 = vmatpush1.xpose.msra.mxu0 0.0
    %1723 = vmatprep.subr.mxu0 0.0
    %1724 = vmatpush1.xpose.msra.mxu0 0.0
    %1725 = vmatprep.subr.mxu0 0.0
    %1726 = vmatpush1.xpose.msra.mxu0 0.0
    %1727 = vmatprep.subr.mxu0 0.0
    %1728 = vmatpush1.xpose.msra.mxu0 0.0
    %1729 = vmatprep.subr.mxu0 0.0
    %1730 = vmatpush1.xpose.msra.mxu0 0.0
    %1731 = vmatprep.subr.mxu0 0.0
    %1732 = vmatpush1.xpose.msra.mxu0 0.0
    %1733 = vmatprep.subr.mxu0 0.0
    %1734 = vmatpush1.xpose.msra.mxu0 0.0
    %1735 = vmatprep.mubr.f32.mxu0 0.0
    %1736 = vmatmul.mubr.f32.gmra.mrb[0].mxu0 %v188
    %v1737 = vpop.f32.mrb[0].mxu0
    %v1738 = vadd.f32 0.0, %v1737
    %v1739 = vpop.f32.mrb[0].mxu0
    %1740 = vdwg.mxu0
    %v1741 = vmul.f32 %v1665, 0.0625
    %v1742 = vmul.f32 %v1738, 0.0625
    %v1745 = vrot.slane %v1741, 7
    %v1746 = vrot.slane %v1742, 7
    %v1749 = vsel %vm803, %v1593, %v1745
    %v1750 = vsel %vm803, %v1594, %v1746
    %v1751 = vld [vmem:[#allocation11] sm:$0xff]
    %v1752 = vld [vmem:[#allocation11 + $0x8] sm:$0xff]
    %v1753 = vadd.f32 %v1749, -1.0
    %v1754 = vadd.f32 %v1750, -1.0
    %v1755 = vlaneseq
    %v1756 = vshrl.u32 %v1755, 7
    %v1757 = vsub.s32 6, %v1756
    %v1758 = vrot.slane %v1751, %v1757
    %v1759 = vlaneseq
    %v1760 = vshrl.u32 %v1759, 7
    %v1761 = vsub.s32 6, %v1760
    %v1762 = vrot.slane %v1752, %v1761
    %v1763 = vsub.f32 %v1753, %v1758
    %v1764 = vsub.f32 %v1754, %v1762
    %v1765 = vsub.f32 %v1758, %v1749
    %v1766 = vsub.f32 %v1762, %v1750
    %v1767 = vmul.f32 %v1765, 1.442695
    %v1768 = vpow.pop %v1767
    %v1769 = vmul.f32 %v1766, 1.442695
    %v1770 = vpow.pop %v1769
    %v1771 = vadd.f32 %v1763, %v1768
    %v1772 = vadd.f32 %v1764, %v1770
    %v1775 = vrot.slane %v1751, 2
    %v1776 = vrot.slane %v1752, 2
    %v1779 = vsub.f32 %v1751, %v1775
    %v1780 = vsub.f32 %v1752, %v1776
    %v1781 = vmul.f32 %v1779, %v1779
    %v1782 = vmul.f32 %v1780, %v1780
    %v1783 = vsub.f32 0.0, %v1749
    %v1784 = vsub.f32 0.0, %v1750
    %v1785 = vmul.f32 %v1783, 1.442695
    %v1786 = vpow.pop %v1785
    %v1787 = vmul.f32 %v1784, 1.442695
    %v1788 = vpow.pop %v1787
    %v1789 = vmul.f32 %v1781, %v1786
    %v1790 = vmul.f32 %v1782, %v1788
    %v1791 = vadd.f32 %v1771, %v1789
    %v1792 = vadd.f32 %v1772, %v1790
    %v1793 = vmul.f32 %v1791, 0.5
    %v1794 = vmul.f32 %v1792, 0.5
    %vm1795 = vcmask 58368
    %v1796 = vsel %vm1795, %v1793, 0.0
    %1797 = vadd.xlane.f32.xlu0 %v1796
    %v1798 = vpop.xlane.xlu0 %1797
    %v1799 = vsel %vm1795, %v1794, 0.0
    %1800 = vadd.xlane.f32.xlu0 %v1799
    %v1801 = vpop.xlane.xlu0 %1800
    %vm1802 = vcmask 1041408
    %v1803 = vsel %vm1802, %v1798, 0.0
    %v1804 = vrot.slane %v1803, 4
    %v1805 = vadd.f32 %v1803, %v1804
    %v1806 = vrot.slane %v1805, 2
    %v1807 = vadd.f32 %v1805, %v1806
    %v1808 = vrot.slane %v1807, 1
    %v1809 = vadd.f32 %v1807, %v1808
    %v1810 = vsel %vm1802, %v1801, 0.0
    %v1811 = vrot.slane %v1810, 4
    %v1812 = vadd.f32 %v1810, %v1811
    %v1813 = vrot.slane %v1812, 2
    %v1814 = vadd.f32 %v1812, %v1813
    %v1815 = vrot.slane %v1814, 1
    %v1816 = vadd.f32 %v1814, %v1815
    %v1817 = vmul.f32 %v1809, 0.09016844
    %v1818 = vmul.f32 %v1816, 0.09016844
    %s1819 = smul.u32 0, 2
    %s1820 = sld [smem:[#allocation4 + %s1819]]
    %p1821 = scmp.eq.s32.totalorder %s1820, 0
    %s1822 = sadd.s32 %s1819, 1
    %s1823 = sld [smem:[#allocation4 + %s1822]]
    %p1824 = scmp.eq.s32.totalorder %s1823, 0
    %p1825 = por %p1821, %p1824
    %vm1826 = vcmask 0
    %1827 = vst.msk [vmem:[#allocation2] sm:$0x1] %vm1826, 0.0
    %1828 = vst.msk [vmem:[#allocation2 + $0x1] sm:$0x1] %vm1826, 0.0
    // Predicated region
    $region58: #{tpu_custom_call.1} parent=1 // pred_check
      %p1829 = pneg %p1825
    $region59: #{tpu_custom_call.1} parent=1 // pred_check_branch
      %1831 = sbr.rel (%p1829) target = $region61
    $region60: #{tpu_custom_call.1} parent=1 // pred_region
      %v1832 = vmul.f32 %v1749, 0.5
      %v1833 = vmul.f32 %v1750, 0.5
      %v1834 = vrot.slane %v1751, 6
      %v1835 = vrot.slane %v1752, 6
      %v1838 = vsub.f32 %v1751, %v1834
      %v1839 = vsub.f32 %v1752, %v1835
      %v1840 = vsub.f32 0.0, %v1832
      %v1841 = vsub.f32 0.0, %v1833
      %v1842 = vmul.f32 %v1840, 1.442695
      %v1843 = vpow.pop %v1842
      %v1844 = vmul.f32 %v1841, 1.442695
      %v1845 = vpow.pop %v1844
      %v1846 = vadd.f32 %v1838, 0.016666668
      %v1847 = vadd.f32 %v1839, 0.016666668
      %v1850 = vrot.slane %v1846, 4
      %v1851 = vrot.slane %v1847, 4
      %v1854 = vmul.f32 %v1843, %v1850
      %v1855 = vmul.f32 %v1845, %v1851
      %v1856 = vmul.f32 %v1854, 0.044715
      %v1857 = vmul.f32 %v1855, 0.044715
      %v1858 = vmul.f32 %v1856, %v1854
      %v1859 = vmul.f32 %v1857, %v1855
      %v1860 = vmul.f32 %v1858, %v1854
      %v1861 = vmul.f32 %v1859, %v1855
      %v1862 = vadd.f32 %v1854, %v1860
      %v1863 = vadd.f32 %v1855, %v1861
      %v1864 = vmul.f32 %v1862, 0.7978846
      %v1865 = vmul.f32 %v1863, 0.7978846
      %v1866 = vtanh.pop %v1864
      %v1867 = vtanh.pop %v1865
      %v1868 = vadd.f32 %v1866, 1.0
      %v1869 = vadd.f32 %v1867, 1.0
      %v1870 = vmul.f32 %v1868, 0.5
      %v1871 = vmul.f32 %v1869, 0.5
      %v1872 = vsub.f32 %v1838, 0.016666668
      %v1873 = vsub.f32 %v1839, 0.016666668
      %v1876 = vrot.slane %v1872, 4
      %v1877 = vrot.slane %v1873, 4
      %v1880 = vmul.f32 %v1843, %v1876
      %v1881 = vmul.f32 %v1845, %v1877
      %v1882 = vmul.f32 %v1880, 0.044715
      %v1883 = vmul.f32 %v1881, 0.044715
      %v1884 = vmul.f32 %v1882, %v1880
      %v1885 = vmul.f32 %v1883, %v1881
      %v1886 = vmul.f32 %v1884, %v1880
      %v1887 = vmul.f32 %v1885, %v1881
      %v1888 = vadd.f32 %v1880, %v1886
      %v1889 = vadd.f32 %v1881, %v1887
      %v1890 = vmul.f32 %v1888, 0.7978846
      %v1891 = vmul.f32 %v1889, 0.7978846
      %v1892 = vtanh.pop %v1890
      %v1893 = vtanh.pop %v1891
      %v1894 = vadd.f32 %v1892, 1.0
      %v1895 = vadd.f32 %v1893, 1.0
      %v1896 = vmul.f32 %v1894, 0.5
      %v1897 = vmul.f32 %v1895, 0.5
      %v1898 = vmax.f32 %v1870, 1e-12
      %v1899 = vmax.f32 %v1871, 1e-12
      %v1900 = vlog2.pop %v1898
      %v1901 = vmul.f32 %v1900, 0.6931472
      %v1902 = vlog2.pop %v1899
      %v1903 = vmul.f32 %v1902, 0.6931472
      %v1904 = vsub.f32 1.0, %v1896
      %v1905 = vsub.f32 1.0, %v1897
      %v1906 = vmax.f32 %v1904, 1e-12
      %v1907 = vmax.f32 %v1905, 1e-12
      %v1908 = vlog2.pop %v1906
      %v1909 = vmul.f32 %v1908, 0.6931472
      %v1910 = vlog2.pop %v1907
      %v1911 = vmul.f32 %v1910, 0.6931472
      %v1912 = vsub.f32 %v1870, %v1896
      %v1913 = vsub.f32 %v1871, %v1897
      %vm1914 = vcmp.lt.f32.partialorder %v1751, -0.999
      %vm1915 = vcmp.lt.f32.partialorder %v1752, -0.999
      %vm1916 = vcmp.gt.f32.partialorder %v1751, 0.999
      %vm1917 = vcmp.gt.f32.partialorder %v1752, 0.999
      %v1918 = vmax.f32 %v1912, 1e-12
      %v1919 = vmax.f32 %v1913, 1e-12
      %v1920 = vlog2.pop %v1918
      %v1921 = vmul.f32 %v1920, 0.6931472
      %v1922 = vlog2.pop %v1919
      %v1923 = vmul.f32 %v1922, 0.6931472
      %v1926 = vrot.slane %v1909, 4
      %v1927 = vrot.slane %v1911, 4
      %v1932 = vrot.slane %v1921, 4
      %v1933 = vrot.slane %v1923, 4
      %v1936 = vsel %vm1916, %v1926, %v1932
      %v1937 = vsel %vm1917, %v1927, %v1933
      %v1940 = vrot.slane %v1901, 4
      %v1941 = vrot.slane %v1903, 4
      %v1944 = vsel %vm1914, %v1940, %v1936
      %v1945 = vsel %vm1915, %v1941, %v1937
      %v1946 = vsub.f32 0.0, %v1944
      %v1947 = vsub.f32 0.0, %v1945
      %vm1948 = vcmask 62468
      %v1949 = vsel %vm1948, %v1946, 0.0
      %1950 = vadd.xlane.f32.xlu0 %v1949
      %v1951 = vpop.xlane.xlu0 %1950
      %v1952 = vsel %vm1948, %v1947, 0.0
      %1953 = vadd.xlane.f32.xlu0 %v1952
      %v1954 = vpop.xlane.xlu0 %1953
      %v1957 = vrot.slane %v1951, 4
      %v1958 = vrot.slane %v1954, 4
      %v1961 = vsel %vm1802, %v1957, 0.0
      %v1962 = vrot.slane %v1961, 4
      %v1963 = vadd.f32 %v1961, %v1962
      %v1964 = vrot.slane %v1963, 2
      %v1965 = vadd.f32 %v1963, %v1964
      %v1966 = vrot.slane %v1965, 1
      %v1967 = vadd.f32 %v1965, %v1966
      %v1968 = vsel %vm1802, %v1958, 0.0
      %v1969 = vrot.slane %v1968, 4
      %v1970 = vadd.f32 %v1968, %v1969
      %v1971 = vrot.slane %v1970, 2
      %v1972 = vadd.f32 %v1970, %v1971
      %v1973 = vrot.slane %v1972, 1
      %v1974 = vadd.f32 %v1972, %v1973
      %v1975 = vmul.f32 %v1967, 0.09016844
      %v1976 = vmul.f32 %v1974, 0.09016844
      %1977 = vst.msk [vmem:[#allocation2] sm:$0x1] %vm1826, %v1975
      %1978 = vst.msk [vmem:[#allocation2 + $0x1] sm:$0x1] %vm1826, %v1976
    $region61: #{tpu_custom_call.1} parent=1 // pred_fallthru
      _
    %vm1979 = vcmp.eq.f32.partialorder %v1751, 0.0
    %vm1980 = vcmp.eq.f32.partialorder %v1752, 0.0
    %v1981 = vld [vmem:[#allocation2] sm:$0x1]
    %v1982 = vld [vmem:[#allocation2 + $0x1] sm:$0x1]
    %v1985 = vlaneseq
    %v1986 = vshrl.u32 %v1985, 7
    %v1987 = vsub.s32 0, %v1986
    %v1988 = vrot.slane %v1981, %v1987
    %v1989 = vlaneseq
    %v1990 = vshrl.u32 %v1989, 7
    %v1991 = vsub.s32 0, %v1990
    %v1992 = vrot.slane %v1982, %v1991
    %v1995 = vsel %vm1979, %v1988, %v1817
    %v1996 = vsel %vm1980, %v1992, %v1818
    %v1997 = vadd.f32 %v1995, 0.0
    %v1998 = vadd.f32 %v1996, 0.0
    %v1999 = vadd.f32 %v1997, 0.0
    %v2000 = vadd.f32 %v1998, 0.0
    %vm2001 = vcmask 7175
    %v2002 = vsel %vm2001, %v1999, 0.0
    %v2003 = vsel %vm2001, %v2000, 0.0
    %v2004 = vadd.f32 %v2002, %v2003
    %v2005 = vmul.f32 %v153, 0.0625
    %v2006 = vmul.f32 %v1442, 0.16666667
    %v2007 = vadd.f32 %v2005, %v2006
    %v2008 = vmul.f32 %v2004, 0.5
    %v2010 = vrot.slane %v2008, 7
    %v2012 = vadd.f32 %v2007, %v2010
    %2013 = vst.msk [vmem:[#allocation13] sm:$0x1] %vm1826, %v2012
    // Predicated region
    $region62: #{tpu_custom_call.1} parent=1 // pred_check
      _
    $region63: #{tpu_custom_call.1} parent=1 // pred_check_branch
      %2015 = sbr.rel (0) target = $region65
    $region64: #{tpu_custom_call.1} parent=1 // pred_region
      %s2017 = ssub.s32 16, 16
      %2018 = vsyncadd [#allocation7], %s2017
      %s2020 = sshll.u32 [#allocation13], 4
      %s2021 = int_to_ptr.vmem [resolvable:$true] %s2020
      %2023 = dma.vmem_to_hbm [thread:$0]  %s2021, 16, %s11, [#allocation7]
    $region65: #{tpu_custom_call.1} parent=1 // pred_fallthru
      _
    // Predicated region
    $region66: #{tpu_custom_call.1} parent=1 // pred_check
      _
    $region67: #{tpu_custom_call.1} parent=1 // pred_check_branch
      %2025 = sbr.rel (0) target = $region69
    $region68: #{tpu_custom_call.1} parent=1 // pred_region
      %2026 = dma.done [#allocation7], 16
    $region69: #{tpu_custom_call.1} parent=1 // pred_fallthru
      _
    %2027 = vsyncpa [#allocation6], 1
    %2028 = vsyncpa [#allocation9], 1
    %2029 = vsyncpa [#allocation12], 1
    %2030 = vsyncpa [#allocation7], 1

</llo_original>
